<compile_context>
chip_gen: v7x
topology: tpu7x:2x2x1
jax: 0.10.0
libtpu: 0.0.40
codegen_flags: <defaults>
</compile_context>

<pallas_src>
import functools

import jax
import jax.numpy as jnp
from jax import lax
from jax.experimental import pallas as pl
from jax.experimental.pallas import tpu as pltpu


def _round_up(x, m):
    return ((x + m - 1) // m) * m


def _pdist_tiles(n):
    """(tm, tn, n_pad) for the pairwise-distance grids.

    tn (lane axis) is a multiple of 128, tm == tn, and the tile only grows while
    padding waste stays small (<= 12.5%), so e.g. N=300 -> 128-tiles / n_pad=384.
    """
    n128 = _round_up(max(n, 1), 128)
    candidates = [128]
    if n >= 512:
        candidates.append(256)
    if n >= 1024:
        candidates.append(512)      # ~6 MiB live VMEM: fits every chip's default scope
    tile = 128
    for t in candidates:
        if _round_up(n, t) <= (n128 * 9) // 8:
            tile = t
    n_pad = _round_up(n, tile)
    return tile, tile, n_pad


def _contraction_tiles(d):
    """(tk, d_pad) for the D (contraction) axis."""
    if d <= 512:
        return d, d                  # single full-depth block (block dim == array dim)
    d_pad = _round_up(d, 128)
    tk = next(t for t in (512, 256, 128) if d_pad % t == 0)
    return tk, d_pad


# ----------------------------------------------------------------------------
# Kernel 1: tiled pairwise-distance matrix (the PyTorch pdist()).
# ----------------------------------------------------------------------------
def _pdist_kernel(ei_ref, ej_ref, out_ref, sqi_ref, sqj_ref, *, squared, eps, tm, tn):
    i = pl.program_id(0)
    j = pl.program_id(1)
    k = pl.program_id(2)
    nk = pl.num_programs(2)

    @pl.when(k == 0)
    def _init():
        out_ref[...] = jnp.zeros_like(out_ref)
        sqi_ref[...] = jnp.zeros_like(sqi_ref)
        sqj_ref[...] = jnp.zeros_like(sqj_ref)

    ei = ei_ref[...]                                           # (tm, tk) f32
    ej = ej_ref[...]                                           # (tn, tk) f32

    # MXU: bf16 operands (native path), f32 accumulation, contract dim 1 vs dim 1.
    # The output block index is k-invariant, so out_ref stays VMEM-resident across
    # k and doubles as the accumulator (no scratch copy).
    out_ref[...] += lax.dot_general(
        ei.astype(jnp.bfloat16), ej.astype(jnp.bfloat16),
        dimension_numbers=(((1,), (1,)), ((), ())),
        preferred_element_type=jnp.float32,
    )

    # Row / col squared norms folded into the k-loop (f32, co-issues with the MXU).
    sqi_ref[...] += jnp.sum(ei * ei, axis=1, keepdims=True)                  # (tm, 1)
    ones = jnp.ones((1, ej.shape[1]), jnp.float32)
    sqj_ref[...] += lax.dot_general(                                         # (1, tn)
        ones, ej * ej, dimension_numbers=(((1,), (1,)), ((), ())),
        preferred_element_type=jnp.float32,
    )

    @pl.when(k == nk - 1)
    def _finalize():
        res = jnp.maximum(sqi_ref[...] + sqj_ref[...] - 2.0 * out_ref[...], eps)
        if not squared:
            res = jnp.sqrt(res)

        @pl.when(i == j)          # tm == tn, so only i == j tiles touch the diagonal
        def _diag_tile():
            row = lax.broadcasted_iota(jnp.int32, (tm, tn), 0)
            col = lax.broadcasted_iota(jnp.int32, (tm, tn), 1)
            out_ref[...] = jnp.where(row == col, 0.0, res)

        @pl.when(i != j)
        def _off_diag_tile():
            out_ref[...] = res


def pdist(e, squared=False, eps=1e-12):
    """Pallas TPU equivalent of the reference pdist(): full (N, N) distance matrix."""
    e = jnp.asarray(e, jnp.float32)
    n, d = e.shape
    tm, tn, n_pad = _pdist_tiles(n)
    tk, d_pad = _contraction_tiles(d)

    e_p = e
    if (n_pad, d_pad) != (n, d):
        e_p = jnp.zeros((n_pad, d_pad), jnp.float32).at[:n, :d].set(e)

    out = pl.pallas_call(
        functools.partial(_pdist_kernel, squared=squared, eps=eps, tm=tm, tn=tn),
        grid=(n_pad // tm, n_pad // tn, d_pad // tk),
        in_specs=[
            pl.BlockSpec((tm, tk), lambda i, j, k: (i, k)),   # row slab of e
            pl.BlockSpec((tn, tk), lambda i, j, k: (j, k)),   # col slab of e
        ],
        out_specs=pl.BlockSpec((tm, tn), lambda i, j, k: (i, j)),
        out_shape=jax.ShapeDtypeStruct((n_pad, n_pad), jnp.float32),
        scratch_shapes=[pltpu.VMEM((tm, 1), jnp.float32),     # row squared norms
                        pltpu.VMEM((1, tn), jnp.float32)],    # col squared norms
        compiler_params=pltpu.CompilerParams(
            dimension_semantics=("parallel", "parallel", "arbitrary")),
    )(e_p, e_p)
    return out[:n, :n]


# ----------------------------------------------------------------------------
# Kernel 2: fused pdist + hardest-positive / hardest-negative mining.
# ----------------------------------------------------------------------------
def _mining_kernel(ei_ref, ej_ref, li_ref, lj_ref, pos_ref, neg_ref,
                   acc_ref, sqi_ref, sqj_ref, pv_ref, pi_ref, nv_ref, ni_ref,
                   *, n_valid, tm, tn):
    i = pl.program_id(0)
    j = pl.program_id(1)
    k = pl.program_id(2)
    nj = pl.num_programs(1)
    nk = pl.num_programs(2)

    @pl.when(jnp.logical_and(j == 0, k == 0))
    def _init_row_state():            # reset the running arg state per row tile
        pv_ref[...] = jnp.full(pv_ref.shape, -jnp.inf, jnp.float32)
        nv_ref[...] = jnp.full(nv_ref.shape, jnp.inf, jnp.float32)
        pi_ref[...] = jnp.zeros(pi_ref.shape, jnp.int32)
        ni_ref[...] = jnp.zeros(ni_ref.shape, jnp.int32)

    @pl.when(k == 0)
    def _init_tile_acc():
        acc_ref[...] = jnp.zeros_like(acc_ref)
        sqi_ref[...] = jnp.zeros_like(sqi_ref)
        sqj_ref[...] = jnp.zeros_like(sqj_ref)

    ei = ei_ref[...]                                           # (tm, tk) bf16
    ej = ej_ref[...]                                           # (tn, tk) bf16
    acc_ref[...] += lax.dot_general(                           # MXU, bf16 -> f32 acc
        ei, ej, dimension_numbers=(((1,), (1,)), ((), ())),
        preferred_element_type=jnp.float32,
    )
    ei_f = ei.astype(jnp.float32)
    ej_f = ej.astype(jnp.float32)
    sqi_ref[...] += jnp.sum(ei_f * ei_f, axis=1, keepdims=True)              # (tm, 1)
    ones = jnp.ones((1, ej.shape[1]), jnp.float32)
    sqj_ref[...] += lax.dot_general(                                         # (1, tn)
        ones, ej_f * ej_f, dimension_numbers=(((1,), (1,)), ((), ())),
        preferred_element_type=jnp.float32,
    )

    @pl.when(k == nk - 1)
    def _update_state():
        # Squared distances suffice for arg-mining (sqrt is monotone).
        dist = sqi_ref[...] + sqj_ref[...] - 2.0 * acc_ref[...]              # (tm, tn)
        row = i * tm + lax.broadcasted_iota(jnp.int32, (tm, tn), 0)
        col = j * tn + lax.broadcasted_iota(jnp.int32, (tm, tn), 1)
        same = li_ref[...] == lj_ref[...]                                    # (tm, tn)
        valid = col < n_valid                                                # padded cols
        pos_mask = valid & same & (row != col)
        neg_mask = valid & jnp.logical_not(same)

        pos_cand = jnp.where(pos_mask, dist, -jnp.inf)
        neg_cand = jnp.where(neg_mask, dist, jnp.inf)

        p_val = jnp.max(pos_cand, axis=1, keepdims=True)                     # (tm, 1)
        n_val = jnp.min(neg_cand, axis=1, keepdims=True)
        # argmax/argmin with first-index tie break, built only from max/min/where.
        col_f = col.astype(jnp.float32)
        p_idx = jnp.min(jnp.where(pos_cand == p_val, col_f, 1e9),
                        axis=1, keepdims=True).astype(jnp.int32)
        n_idx = jnp.min(jnp.where(neg_cand == n_val, col_f, 1e9),
                        axis=1, keepdims=True).astype(jnp.int32)

        p_better = p_val > pv_ref[...]        # strict: keeps earliest index on ties
        pv_ref[...] = jnp.where(p_better, p_val, pv_ref[...])
        pi_ref[...] = jnp.where(p_better, p_idx, pi_ref[...])
        n_better = n_val < nv_ref[...]
        nv_ref[...] = jnp.where(n_better, n_val, nv_ref[...])
        ni_ref[...] = jnp.where(n_better, n_idx, ni_ref[...])

    @pl.when(jnp.logical_and(j == nj - 1, k == nk - 1))
    def _write_out():
        pos_ref[...] = pi_ref[...]
        neg_ref[...] = ni_ref[...]


def hardest_mining(embeddings, labels):
    """Fused pdist + hardest-positive / hardest-negative mining.

    Returns (pos_idx, neg_idx), each int32 (N,).  The (N, N) distance matrix is
    never written to HBM; only two (N,) index vectors come back.
    """
    n, d = embeddings.shape
    tm, tn, n_pad = _pdist_tiles(n)
    tk, d_pad = _contraction_tiles(d)

    e_bf = embeddings.astype(jnp.bfloat16)        # native MXU path + half the HBM bytes
    if (n_pad, d_pad) != (n, d):
        e_bf = jnp.zeros((n_pad, d_pad), jnp.bfloat16).at[:n, :d].set(e_bf)

    lab = jnp.asarray(labels, jnp.int32)
    if n_pad != n:
        lab = jnp.full((n_pad,), -1, jnp.int32).at[:n].set(lab)
    lab_rows = lab.reshape(n_pad, 1)
    lab_cols = lab.reshape(1, n_pad)

    pos_idx, neg_idx = pl.pallas_call(
        functools.partial(_mining_kernel, n_valid=n, tm=tm, tn=tn),
        grid=(n_pad // tm, n_pad // tn, d_pad // tk),
        in_specs=[
            pl.BlockSpec((tm, tk), lambda i, j, k: (i, k)),   # anchor (row) slab
            pl.BlockSpec((tn, tk), lambda i, j, k: (j, k)),   # candidate (col) slab
            pl.BlockSpec((tm, 1), lambda i, j, k: (i, 0)),    # row labels
            pl.BlockSpec((1, tn), lambda i, j, k: (0, j)),    # col labels
        ],
        out_specs=(pl.BlockSpec((tm, 1), lambda i, j, k: (i, 0)),
                   pl.BlockSpec((tm, 1), lambda i, j, k: (i, 0))),
        out_shape=(jax.ShapeDtypeStruct((n_pad, 1), jnp.int32),
                   jax.ShapeDtypeStruct((n_pad, 1), jnp.int32)),
        scratch_shapes=[
            pltpu.VMEM((tm, tn), jnp.float32),   # e_i @ e_j^T accumulator
            pltpu.VMEM((tm, 1), jnp.float32),    # row squared norms
            pltpu.VMEM((1, tn), jnp.float32),    # col squared norms
            pltpu.VMEM((tm, 1), jnp.float32),    # running hardest-positive distance
            pltpu.VMEM((tm, 1), jnp.int32),      # running hardest-positive index
            pltpu.VMEM((tm, 1), jnp.float32),    # running hardest-negative distance
            pltpu.VMEM((tm, 1), jnp.int32),      # running hardest-negative index
        ],
        compiler_params=pltpu.CompilerParams(
            dimension_semantics=("parallel", "arbitrary", "arbitrary")),
    )(e_bf, e_bf, lab_rows, lab_cols)
    return pos_idx[:n, 0], neg_idx[:n, 0]


# ----------------------------------------------------------------------------
# Kernel 3: triplet margin loss (reduction='none'), F.triplet_margin_loss
# semantics (pairwise_distance eps = 1e-6).  Row-tiled, lane-dense output.
# ----------------------------------------------------------------------------
def _triplet_loss_kernel(a_ref, p_ref, n_ref, out_ref, *, margin, p, eps):
    a = a_ref[...].astype(jnp.float32)
    pos = p_ref[...].astype(jnp.float32)
    neg = n_ref[...].astype(jnp.float32)

    def pnorm(diff):
        if p == 2.0:                 # VPU mul + one sqrt per row (no pow/exp/log chain)
            return jnp.sqrt(jnp.sum(diff * diff, axis=1))
        if p == 1.0:
            return jnp.sum(jnp.abs(diff), axis=1)
        # TODO(synk): generic non-integer p still goes through pow (exp/log on EUP).
        return jnp.power(jnp.sum(jnp.power(jnp.abs(diff), p), axis=1), 1.0 / p)

    d_ap = pnorm(a - pos + eps)                                    # (tm,)
    d_an = pnorm(a - neg + eps)                                    # (tm,)
    loss = jnp.maximum(d_ap - d_an + margin, 0.0)
    out_ref[...] = loss[None, :]                                   # lane-dense (1, tm)


def triplet_margin_loss(anchor, positive, negative, *, margin, p):
    n, d = anchor.shape
    n8 = _round_up(n, 8)

    # VMEM guard: 3 inputs x (tm, D) f32 x 2 pipeline buffers must stay well under
    # the smallest default scoped VMEM (16 MiB on v5e).
    budget = 8 * 1024 * 1024
    row_bytes = 3 * d * 4 * 2
    vmem_limit = None
    if n8 * row_bytes <= budget:
        tm = n_pad = n8                                # single tile, minimal padding
    else:
        tm = 256                                       # (1, tm) output needs tm % 128 == 0
        while tm > 128 and tm * row_bytes > budget:
            tm //= 2
        if tm * row_bytes > budget:
            # TODO(synk): for very wide embeddings add a D grid axis with partial-sum
            # accumulation instead of just raising the scoped-VMEM limit.
            vmem_limit = min(int(tm * row_bytes * 1.5), 48 * 1024 * 1024)
        n_pad = _round_up(n, tm)

    def pad(x):
        x = jnp.asarray(x, jnp.float32)
        if n_pad != n:
            x = jnp.zeros((n_pad, d), jnp.float32).at[:n].set(x)
        return x

    a_p, p_p, n_p = pad(anchor), pad(positive), pad(negative)

    loss = pl.pallas_call(
        functools.partial(_triplet_loss_kernel,
                          margin=float(margin), p=float(p), eps=1e-6),
        grid=(n_pad // tm,),
        in_specs=[
            pl.BlockSpec((tm, d), lambda i: (i, 0)),
            pl.BlockSpec((tm, d), lambda i: (i, 0)),
            pl.BlockSpec((tm, d), lambda i: (i, 0)),
        ],
        out_specs=pl.BlockSpec((1, tm), lambda i: (0, i)),
        out_shape=jax.ShapeDtypeStruct((1, n_pad), jnp.float32),
        compiler_params=pltpu.CompilerParams(
            dimension_semantics=("parallel",), vmem_limit_bytes=vmem_limit),
    )(a_p, p_p, n_p)
    return loss[0, :n]                                             # (N,)


# ----------------------------------------------------------------------------
# Deterministic sampler: hardest positive / hardest negative per anchor.
# ----------------------------------------------------------------------------
class HardestTripletSampler:
    """Hardest-positive / hardest-negative miner using the fused Pallas kernel.

    `dist_func` (installed by Triplet.__init__) is kept for API parity with the
    PyTorch module, but the fused path never materialises the (N, N) matrix;
    sqrt is monotone so squared distances give identical argmax/argmin.
    """

    def __init__(self):
        self.dist_func = None

    def __call__(self, embeddings, labels):
        n = embeddings.shape[0]
        anchor_idx = jnp.arange(n, dtype=jnp.int32)
        pos_idx, neg_idx = hardest_mining(embeddings, labels)
        return anchor_idx, pos_idx, neg_idx


# ----------------------------------------------------------------------------
# _Triplet module equivalent
# ----------------------------------------------------------------------------
class Triplet:
    def __init__(self, p=2, margin=0.2, sampler=None, reduce=True, size_average=True):
        self.p = p
        self.margin = margin
        self.sampler = sampler if sampler is not None else HardestTripletSampler()
        self.sampler.dist_func = lambda e: pdist(e, squared=(p == 2))
        self.reduce = reduce
        self.size_average = size_average

    def __call__(self, embeddings, labels):
        anchor_idx, pos_idx, neg_idx = self.sampler(embeddings, labels)
        # TODO(synk): fuse these row gathers into the loss kernel (scalar-prefetched
        # indices + per-row DMA) to avoid materializing the gathered (N, D) arrays.
        anchor_embed = jnp.take(embeddings, anchor_idx, axis=0)
        positive_embed = jnp.take(embeddings, pos_idx, axis=0)
        negative_embed = jnp.take(embeddings, neg_idx, axis=0)
        loss = triplet_margin_loss(
            anchor_embed, positive_embed, negative_embed, margin=self.margin, p=self.p
        )
        if not self.reduce:
            return loss
        if self.size_average:
            return jnp.mean(loss)
        return jnp.sum(loss)


if __name__ == "__main__":
    key = jax.random.PRNGKey(0)

    # ---- small shapes consistent with the module: N=8 embeddings, D=32 ----
    N, D = 8, 32
    embeddings = jax.random.normal(key, (N, D), dtype=jnp.float32)
    labels = jnp.array([0, 0, 1, 1, 2, 2, 3, 3], dtype=jnp.int32)

    module = Triplet(p=2, margin=0.2, sampler=HardestTripletSampler(),
                     reduce=True, size_average=True)
    loss = module(embeddings, labels)
    jax.block_until_ready(loss)
    assert loss.shape == () and bool(jnp.isfinite(loss))

    # ---- multi-tile / padded / k-accumulation path vs pure-JAX references ----
    N2, D2 = 300, 640                 # n_pad=384 (128-tiles), D split into 5 k-blocks
    k1, _ = jax.random.split(key)
    emb2 = jax.random.normal(k1, (N2, D2), dtype=jnp.float32)
    labels2 = jnp.arange(N2, dtype=jnp.int32) % 5

    sq2 = jnp.sum(emb2 * emb2, axis=1)
    prod = jnp.dot(emb2, emb2.T, precision=lax.Precision.HIGHEST)
    off_diag = 1.0 - jnp.eye(N2, dtype=jnp.float32)
    dist_sq_ref = jnp.maximum(sq2[:, None] + sq2[None, :] - 2.0 * prod, 1e-12) * off_diag
    dist_sq = pdist(emb2, squared=True)
    assert jnp.allclose(dist_sq, dist_sq_ref, rtol=1e-2, atol=0.5)
    dist_eu = pdist(emb2, squared=False)
    dist_eu_ref = jnp.sqrt(
        jnp.maximum(sq2[:, None] + sq2[None, :] - 2.0 * prod, 1e-12)) * off_diag
    assert jnp.allclose(dist_eu, dist_eu_ref, rtol=1e-2, atol=0.1)

    # fused mining: indices must respect the label constraints
    a_i, p_i, n_i = module.sampler(emb2, labels2)
    assert bool(jnp.all(jnp.take(labels2, p_i) == labels2))
    assert bool(jnp.all(p_i != jnp.arange(N2)))
    assert bool(jnp.all(jnp.take(labels2, n_i) != labels2))

    # loss kernel vs reference on the mined triplets
    a_e = jnp.take(emb2, a_i, axis=0)
    p_e = jnp.take(emb2, p_i, axis=0)
    n_e = jnp.take(emb2, n_i, axis=0)
    loss_pl = triplet_margin_loss(a_e, p_e, n_e, margin=0.2, p=2)
    d_ap = jnp.sqrt(jnp.sum((a_e - p_e + 1e-6) ** 2, axis=1))
    d_an = jnp.sqrt(jnp.sum((a_e - n_e + 1e-6) ** 2, axis=1))
    loss_ref = jnp.maximum(d_ap - d_an + 0.2, 0.0)
    assert jnp.allclose(loss_pl, loss_ref, rtol=1e-3, atol=1e-3)

    loss2 = Triplet(p=2, margin=0.2, sampler=HardestTripletSampler())(emb2, labels2)
    jax.block_until_ready(loss2)
    assert bool(jnp.isfinite(loss2))

    print("KERNEL_OK")
</pallas_src>

<mosaic_0001>
module attributes {stable_mosaic.version = 11 : i64} {
  func.func @_mining_kernel(%arg0: i32, %arg1: i32, %arg2: i32, %arg3: memref<128x32xbf16, #tpu.memory_space<vmem>>, %arg4: memref<128x32xbf16, #tpu.memory_space<vmem>>, %arg5: memref<128x1xi32, #tpu.memory_space<vmem>>, %arg6: memref<1x128xi32, #tpu.memory_space<vmem>>, %arg7: memref<128x1xi32, #tpu.memory_space<vmem>>, %arg8: memref<128x1xi32, #tpu.memory_space<vmem>>, %arg9: memref<128x128xf32, #tpu.memory_space<vmem>>, %arg10: memref<128x1xf32, #tpu.memory_space<vmem>>, %arg11: memref<1x128xf32, #tpu.memory_space<vmem>>, %arg12: memref<128x1xf32, #tpu.memory_space<vmem>>, %arg13: memref<128x1xi32, #tpu.memory_space<vmem>>, %arg14: memref<128x1xf32, #tpu.memory_space<vmem>>, %arg15: memref<128x1xi32, #tpu.memory_space<vmem>>) attributes {dimension_semantics = [#tpu.dimension_semantics<parallel>, #tpu.dimension_semantics<arbitrary>, #tpu.dimension_semantics<arbitrary>], iteration_bounds = array<i64: 1, 1, 1>, scalar_prefetch = 0 : i64, scratch_operands = 7 : i64, tpu.core_type = #tpu.core_type<tc>, window_params = [{transform_indices = @transform_0, window_bounds = array<i64: 128, 32>}, {transform_indices = @transform_1, window_bounds = array<i64: 128, 32>}, {transform_indices = @transform_2, window_bounds = array<i64: 128, 1>}, {transform_indices = @transform_3, window_bounds = array<i64: 1, 128>}, {transform_indices = @transform_4, window_bounds = array<i64: 128, 1>}, {transform_indices = @transform_5, window_bounds = array<i64: 128, 1>}]} {
    %c0_i32 = arith.constant 0 : i32
    %0 = arith.cmpi eq, %arg1, %c0_i32 : i32
    %c0_i32_0 = arith.constant 0 : i32
    %1 = arith.cmpi eq, %arg2, %c0_i32_0 : i32
    %2 = arith.andi %0, %1 : i1
    %3 = arith.extui %2 : i1 to i32
    %c0_i32_1 = arith.constant 0 : i32
    %4 = arith.cmpi ne, %3, %c0_i32_1 : i32
    scf.if %4 {
      %cst_27 = arith.constant 0xFF800000 : f32
      %36 = vector.broadcast %cst_27 : f32 to vector<128x1xf32>
      %c0_28 = arith.constant 0 : index
      %c0_29 = arith.constant 0 : index
      %37 = vector.load %arg12[%c0_28, %c0_29] : memref<128x1xf32, #tpu.memory_space<vmem>>, vector<128x1xf32>
      tpu.vector_store %arg12[%c0_28, %c0_29], %36 {strides = array<i32>} : memref<128x1xf32, #tpu.memory_space<vmem>>, vector<128x1xf32>,
      %cst_30 = arith.constant 0x7F800000 : f32
      %38 = vector.broadcast %cst_30 : f32 to vector<128x1xf32>
      %c0_31 = arith.constant 0 : index
      %c0_32 = arith.constant 0 : index
      %39 = vector.load %arg14[%c0_31, %c0_32] : memref<128x1xf32, #tpu.memory_space<vmem>>, vector<128x1xf32>
      tpu.vector_store %arg14[%c0_31, %c0_32], %38 {strides = array<i32>} : memref<128x1xf32, #tpu.memory_space<vmem>>, vector<128x1xf32>,
      %c0_i32_33 = arith.constant 0 : i32
      %40 = vector.broadcast %c0_i32_33 : i32 to vector<128x1xi32>
      %c0_34 = arith.constant 0 : index
      %c0_35 = arith.constant 0 : index
      %41 = vector.load %arg13[%c0_34, %c0_35] : memref<128x1xi32, #tpu.memory_space<vmem>>, vector<128x1xi32>
      tpu.vector_store %arg13[%c0_34, %c0_35], %40 {strides = array<i32>} : memref<128x1xi32, #tpu.memory_space<vmem>>, vector<128x1xi32>,
      %c0_i32_36 = arith.constant 0 : i32
      %42 = vector.broadcast %c0_i32_36 : i32 to vector<128x1xi32>
      %c0_37 = arith.constant 0 : index
      %c0_38 = arith.constant 0 : index
      %43 = vector.load %arg15[%c0_37, %c0_38] : memref<128x1xi32, #tpu.memory_space<vmem>>, vector<128x1xi32>
      tpu.vector_store %arg15[%c0_37, %c0_38], %42 {strides = array<i32>} : memref<128x1xi32, #tpu.memory_space<vmem>>, vector<128x1xi32>,
    } else {
    }
    %c0_i32_2 = arith.constant 0 : i32
    %5 = arith.cmpi eq, %arg2, %c0_i32_2 : i32
    %6 = arith.extui %5 : i1 to i32
    %c0_i32_3 = arith.constant 0 : i32
    %7 = arith.cmpi ne, %6, %c0_i32_3 : i32
    scf.if %7 {
      %cst_27 = arith.constant 0.000000e+00 : f32
      %36 = vector.broadcast %cst_27 : f32 to vector<128x128xf32>
      %c0_28 = arith.constant 0 : index
      %c0_29 = arith.constant 0 : index
      %37 = vector.load %arg9[%c0_28, %c0_29] : memref<128x128xf32, #tpu.memory_space<vmem>>, vector<128x128xf32>
      tpu.vector_store %arg9[%c0_28, %c0_29], %36 {strides = array<i32>} : memref<128x128xf32, #tpu.memory_space<vmem>>, vector<128x128xf32>,
      %cst_30 = arith.constant 0.000000e+00 : f32
      %38 = vector.broadcast %cst_30 : f32 to vector<128x1xf32>
      %c0_31 = arith.constant 0 : index
      %c0_32 = arith.constant 0 : index
      %39 = vector.load %arg10[%c0_31, %c0_32] : memref<128x1xf32, #tpu.memory_space<vmem>>, vector<128x1xf32>
      tpu.vector_store %arg10[%c0_31, %c0_32], %38 {strides = array<i32>} : memref<128x1xf32, #tpu.memory_space<vmem>>, vector<128x1xf32>,
      %cst_33 = arith.constant 0.000000e+00 : f32
      %40 = vector.broadcast %cst_33 : f32 to vector<1x128xf32>
      %c0_34 = arith.constant 0 : index
      %c0_35 = arith.constant 0 : index
      %41 = vector.load %arg11[%c0_34, %c0_35] : memref<1x128xf32, #tpu.memory_space<vmem>>, vector<1x128xf32>
      tpu.vector_store %arg11[%c0_34, %c0_35], %40 {strides = array<i32>} : memref<1x128xf32, #tpu.memory_space<vmem>>, vector<1x128xf32>,
    } else {
    }
    %c0 = arith.constant 0 : index
    %c0_4 = arith.constant 0 : index
    %8 = vector.load %arg3[%c0, %c0_4] : memref<128x32xbf16, #tpu.memory_space<vmem>>, vector<128x32xbf16>
    %c0_5 = arith.constant 0 : index
    %c0_6 = arith.constant 0 : index
    %9 = vector.load %arg4[%c0_5, %c0_6] : memref<128x32xbf16, #tpu.memory_space<vmem>>, vector<128x32xbf16>
    %c0_7 = arith.constant 0 : index
    %c0_8 = arith.constant 0 : index
    %10 = vector.load %arg9[%c0_7, %c0_8] : memref<128x128xf32, #tpu.memory_space<vmem>>, vector<128x128xf32>
    %cst = arith.constant dense<0.000000e+00> : vector<128x128xf32>
    %11 = tpu.matmul %8, %9, %cst {dimension_numbers = #tpu.dot_dimension_numbers<[1], [1], [0], [0], [0, 0, 1, 0], [], []>} : vector<128x32xbf16>, vector<128x32xbf16>, vector<128x128xf32> -> vector<128x128xf32>
    %12 = arith.addf %10, %11 : vector<128x128xf32>
    %c0_9 = arith.constant 0 : index
    %c0_10 = arith.constant 0 : index
    %13 = vector.load %arg9[%c0_9, %c0_10] : memref<128x128xf32, #tpu.memory_space<vmem>>, vector<128x128xf32>
    tpu.vector_store %arg9[%c0_9, %c0_10], %12 {strides = array<i32>} : memref<128x128xf32, #tpu.memory_space<vmem>>, vector<128x128xf32>,
    %14 = arith.extf %8 : vector<128x32xbf16> to vector<128x32xf32>
    %15 = arith.extf %9 : vector<128x32xbf16> to vector<128x32xf32>
    %c0_11 = arith.constant 0 : index
    %c0_12 = arith.constant 0 : index
    %16 = vector.load %arg10[%c0_11, %c0_12] : memref<128x1xf32, #tpu.memory_space<vmem>>, vector<128x1xf32>
    %17 = arith.mulf %14, %14 : vector<128x32xf32>
    %cst_13 = arith.constant dense<0.000000e+00> : vector<128xf32>
    %18 = vector.multi_reduction <add>, %17, %cst_13 [1] : vector<128x32xf32> to vector<128xf32>
    %19 = vector.shape_cast %18 : vector<128xf32> to vector<128x1xf32>
    %20 = arith.addf %16, %19 : vector<128x1xf32>
    %c0_14 = arith.constant 0 : index
    %c0_15 = arith.constant 0 : index
    %21 = vector.load %arg10[%c0_14, %c0_15] : memref<128x1xf32, #tpu.memory_space<vmem>>, vector<128x1xf32>
    tpu.vector_store %arg10[%c0_14, %c0_15], %20 {strides = array<i32>} : memref<128x1xf32, #tpu.memory_space<vmem>>, vector<128x1xf32>,
    %cst_16 = arith.constant 1.000000e+00 : f32
    %22 = vector.broadcast %cst_16 : f32 to vector<1x32xf32>
    %c0_17 = arith.constant 0 : index
    %c0_18 = arith.constant 0 : index
    %23 = vector.load %arg11[%c0_17, %c0_18] : memref<1x128xf32, #tpu.memory_space<vmem>>, vector<1x128xf32>
    %24 = arith.mulf %15, %15 : vector<128x32xf32>
    %cst_19 = arith.constant dense<0.000000e+00> : vector<1x128xf32>
    %25 = tpu.matmul %22, %24, %cst_19 {dimension_numbers = #tpu.dot_dimension_numbers<[1], [1], [0], [0], [0, 0, 1, 0], [], []>} : vector<1x32xf32>, vector<128x32xf32>, vector<1x128xf32> -> vector<1x128xf32>
    %26 = arith.addf %23, %25 : vector<1x128xf32>
    %c0_20 = arith.constant 0 : index
    %c0_21 = arith.constant 0 : index
    %27 = vector.load %arg11[%c0_20, %c0_21] : memref<1x128xf32, #tpu.memory_space<vmem>>, vector<1x128xf32>
    tpu.vector_store %arg11[%c0_20, %c0_21], %26 {strides = array<i32>} : memref<1x128xf32, #tpu.memory_space<vmem>>, vector<1x128xf32>,
    %c0_i32_22 = arith.constant 0 : i32
    %28 = arith.cmpi eq, %arg2, %c0_i32_22 : i32
    %29 = arith.extui %28 : i1 to i32
    %c0_i32_23 = arith.constant 0 : i32
    %30 = arith.cmpi ne, %29, %c0_i32_23 : i32
    scf.if %30 {
      %c0_27 = arith.constant 0 : index
      %c0_28 = arith.constant 0 : index
      %36 = vector.load %arg10[%c0_27, %c0_28] : memref<128x1xf32, #tpu.memory_space<vmem>>, vector<128x1xf32>
      %c0_29 = arith.constant 0 : index
      %c0_30 = arith.constant 0 : index
      %37 = vector.load %arg11[%c0_29, %c0_30] : memref<1x128xf32, #tpu.memory_space<vmem>>, vector<1x128xf32>
      %38 = vector.broadcast %36 : vector<128x1xf32> to vector<128x128xf32>
      %39 = vector.broadcast %37 : vector<1x128xf32> to vector<128x128xf32>
      %40 = arith.addf %38, %39 : vector<128x128xf32>
      %c0_31 = arith.constant 0 : index
      %c0_32 = arith.constant 0 : index
      %41 = vector.load %arg9[%c0_31, %c0_32] : memref<128x128xf32, #tpu.memory_space<vmem>>, vector<128x128xf32>
      %cst_33 = arith.constant 2.000000e+00 : f32
      %42 = vector.broadcast %cst_33 : f32 to vector<128x128xf32>
      %43 = arith.mulf %42, %41 : vector<128x128xf32>
      %44 = arith.subf %40, %43 : vector<128x128xf32>
      %c128_i32 = arith.constant 128 : i32
      %45 = arith.muli %arg0, %c128_i32 : i32
      %46 = tpu.iota {dimensions = array<i32: 0>} : vector<128x128xi32>
      %47 = vector.broadcast %45 : i32 to vector<128x128xi32>
      %48 = arith.addi %47, %46 : vector<128x128xi32>
      %c128_i32_34 = arith.constant 128 : i32
      %49 = arith.muli %arg1, %c128_i32_34 : i32
      %50 = tpu.iota {dimensions = array<i32: 1>} : vector<128x128xi32>
      %51 = vector.broadcast %49 : i32 to vector<128x128xi32>
      %52 = arith.addi %51, %50 : vector<128x128xi32>
      %c0_35 = arith.constant 0 : index
      %c0_36 = arith.constant 0 : index
      %53 = vector.load %arg5[%c0_35, %c0_36] : memref<128x1xi32, #tpu.memory_space<vmem>>, vector<128x1xi32>
      %c0_37 = arith.constant 0 : index
      %c0_38 = arith.constant 0 : index
      %54 = vector.load %arg6[%c0_37, %c0_38] : memref<1x128xi32, #tpu.memory_space<vmem>>, vector<1x128xi32>
      %55 = vector.broadcast %53 : vector<128x1xi32> to vector<128x128xi32>
      %56 = vector.broadcast %54 : vector<1x128xi32> to vector<128x128xi32>
      %57 = arith.cmpi eq, %55, %56 : vector<128x128xi32>
      %c8_i32 = arith.constant 8 : i32
      %58 = vector.broadcast %c8_i32 : i32 to vector<128x128xi32>
      %59 = arith.cmpi slt, %52, %58 : vector<128x128xi32>
      %60 = arith.andi %59, %57 : vector<128x128xi1>
      %61 = arith.cmpi ne, %48, %52 : vector<128x128xi32>
      %62 = arith.andi %60, %61 : vector<128x128xi1>
      %cst_39 = arith.constant dense<true> : vector<128x128xi1>
      %63 = arith.xori %57, %cst_39 : vector<128x128xi1>
      %64 = arith.andi %59, %63 : vector<128x128xi1>
      %cst_40 = arith.constant 0xFF800000 : f32
      %65 = vector.broadcast %cst_40 : f32 to vector<128x128xf32>
      %66 = arith.select %62, %44, %65 : vector<128x128xi1>, vector<128x128xf32>
      %cst_41 = arith.constant 0x7F800000 : f32
      %67 = vector.broadcast %cst_41 : f32 to vector<128x128xf32>
      %68 = arith.select %64, %44, %67 : vector<128x128xi1>, vector<128x128xf32>
      %cst_42 = arith.constant dense<0xFF800000> : vector<128xf32>
      %69 = vector.multi_reduction <maximumf>, %66, %cst_42 [1] : vector<128x128xf32> to vector<128xf32>
      %70 = vector.shape_cast %69 : vector<128xf32> to vector<128x1xf32>
      %cst_43 = arith.constant dense<0x7F800000> : vector<128xf32>
      %71 = vector.multi_reduction <minimumf>, %68, %cst_43 [1] : vector<128x128xf32> to vector<128xf32>
      %72 = vector.shape_cast %71 : vector<128xf32> to vector<128x1xf32>
      %73 = arith.sitofp %52 : vector<128x128xi32> to vector<128x128xf32>
      %74 = vector.broadcast %70 : vector<128x1xf32> to vector<128x128xf32>
      %75 = arith.cmpf oeq, %66, %74 : vector<128x128xf32>
      %cst_44 = arith.constant 1.000000e+09 : f32
      %76 = vector.broadcast %cst_44 : f32 to vector<128x128xf32>
      %77 = arith.select %75, %73, %76 : vector<128x128xi1>, vector<128x128xf32>
      %cst_45 = arith.constant dense<0x7F800000> : vector<128xf32>
      %78 = vector.multi_reduction <minimumf>, %77, %cst_45 [1] : vector<128x128xf32> to vector<128xf32>
      %79 = vector.shape_cast %78 : vector<128xf32> to vector<128x1xf32>
      %80 = arith.fptosi %79 : vector<128x1xf32> to vector<128x1xi32>
      %81 = vector.broadcast %72 : vector<128x1xf32> to vector<128x128xf32>
      %82 = arith.cmpf oeq, %68, %81 : vector<128x128xf32>
      %cst_46 = arith.constant 1.000000e+09 : f32
      %83 = vector.broadcast %cst_46 : f32 to vector<128x128xf32>
      %84 = arith.select %82, %73, %83 : vector<128x128xi1>, vector<128x128xf32>
      %cst_47 = arith.constant dense<0x7F800000> : vector<128xf32>
      %85 = vector.multi_reduction <minimumf>, %84, %cst_47 [1] : vector<128x128xf32> to vector<128xf32>
      %86 = vector.shape_cast %85 : vector<128xf32> to vector<128x1xf32>
      %87 = arith.fptosi %86 : vector<128x1xf32> to vector<128x1xi32>
      %c0_48 = arith.constant 0 : index
      %c0_49 = arith.constant 0 : index
      %88 = vector.load %arg12[%c0_48, %c0_49] : memref<128x1xf32, #tpu.memory_space<vmem>>, vector<128x1xf32>
      %89 = arith.cmpf ogt, %70, %88 : vector<128x1xf32>
      %c0_50 = arith.constant 0 : index
      %c0_51 = arith.constant 0 : index
      %90 = vector.load %arg12[%c0_50, %c0_51] : memref<128x1xf32, #tpu.memory_space<vmem>>, vector<128x1xf32>
      %91 = arith.select %89, %70, %90 : vector<128x1xi1>, vector<128x1xf32>
      %c0_52 = arith.constant 0 : index
      %c0_53 = arith.constant 0 : index
      %92 = vector.load %arg12[%c0_52, %c0_53] : memref<128x1xf32, #tpu.memory_space<vmem>>, vector<128x1xf32>
      tpu.vector_store %arg12[%c0_52, %c0_53], %91 {strides = array<i32>} : memref<128x1xf32, #tpu.memory_space<vmem>>, vector<128x1xf32>,
      %c0_54 = arith.constant 0 : index
      %c0_55 = arith.constant 0 : index
      %93 = vector.load %arg13[%c0_54, %c0_55] : memref<128x1xi32, #tpu.memory_space<vmem>>, vector<128x1xi32>
      %94 = arith.select %89, %80, %93 : vector<128x1xi1>, vector<128x1xi32>
      %c0_56 = arith.constant 0 : index
      %c0_57 = arith.constant 0 : index
      %95 = vector.load %arg13[%c0_56, %c0_57] : memref<128x1xi32, #tpu.memory_space<vmem>>, vector<128x1xi32>
      tpu.vector_store %arg13[%c0_56, %c0_57], %94 {strides = array<i32>} : memref<128x1xi32, #tpu.memory_space<vmem>>, vector<128x1xi32>,
      %c0_58 = arith.constant 0 : index
      %c0_59 = arith.constant 0 : index
      %96 = vector.load %arg14[%c0_58, %c0_59] : memref<128x1xf32, #tpu.memory_space<vmem>>, vector<128x1xf32>
      %97 = arith.cmpf olt, %72, %96 : vector<128x1xf32>
      %c0_60 = arith.constant 0 : index
      %c0_61 = arith.constant 0 : index
      %98 = vector.load %arg14[%c0_60, %c0_61] : memref<128x1xf32, #tpu.memory_space<vmem>>, vector<128x1xf32>
      %99 = arith.select %97, %72, %98 : vector<128x1xi1>, vector<128x1xf32>
      %c0_62 = arith.constant 0 : index
      %c0_63 = arith.constant 0 : index
      %100 = vector.load %arg14[%c0_62, %c0_63] : memref<128x1xf32, #tpu.memory_space<vmem>>, vector<128x1xf32>
      tpu.vector_store %arg14[%c0_62, %c0_63], %99 {strides = array<i32>} : memref<128x1xf32, #tpu.memory_space<vmem>>, vector<128x1xf32>,
      %c0_64 = arith.constant 0 : index
      %c0_65 = arith.constant 0 : index
      %101 = vector.load %arg15[%c0_64, %c0_65] : memref<128x1xi32, #tpu.memory_space<vmem>>, vector<128x1xi32>
      %102 = arith.select %97, %87, %101 : vector<128x1xi1>, vector<128x1xi32>
      %c0_66 = arith.constant 0 : index
      %c0_67 = arith.constant 0 : index
      %103 = vector.load %arg15[%c0_66, %c0_67] : memref<128x1xi32, #tpu.memory_space<vmem>>, vector<128x1xi32>
      tpu.vector_store %arg15[%c0_66, %c0_67], %102 {strides = array<i32>} : memref<128x1xi32, #tpu.memory_space<vmem>>, vector<128x1xi32>,
    } else {
    }
    %c0_i32_24 = arith.constant 0 : i32
    %31 = arith.cmpi eq, %arg1, %c0_i32_24 : i32
    %c0_i32_25 = arith.constant 0 : i32
    %32 = arith.cmpi eq, %arg2, %c0_i32_25 : i32
    %33 = arith.andi %31, %32 : i1
    %34 = arith.extui %33 : i1 to i32
    %c0_i32_26 = arith.constant 0 : i32
    %35 = arith.cmpi ne, %34, %c0_i32_26 : i32
    scf.if %35 {
      %c0_27 = arith.constant 0 : index
      %c0_28 = arith.constant 0 : index
      %36 = vector.load %arg13[%c0_27, %c0_28] : memref<128x1xi32, #tpu.memory_space<vmem>>, vector<128x1xi32>
      %c0_29 = arith.constant 0 : index
      %c0_30 = arith.constant 0 : index
      %37 = vector.load %arg7[%c0_29, %c0_30] : memref<128x1xi32, #tpu.memory_space<vmem>>, vector<128x1xi32>
      tpu.vector_store %arg7[%c0_29, %c0_30], %36 {strides = array<i32>} : memref<128x1xi32, #tpu.memory_space<vmem>>, vector<128x1xi32>,
      %c0_31 = arith.constant 0 : index
      %c0_32 = arith.constant 0 : index
      %38 = vector.load %arg15[%c0_31, %c0_32] : memref<128x1xi32, #tpu.memory_space<vmem>>, vector<128x1xi32>
      %c0_33 = arith.constant 0 : index
      %c0_34 = arith.constant 0 : index
      %39 = vector.load %arg8[%c0_33, %c0_34] : memref<128x1xi32, #tpu.memory_space<vmem>>, vector<128x1xi32>
      tpu.vector_store %arg8[%c0_33, %c0_34], %38 {strides = array<i32>} : memref<128x1xi32, #tpu.memory_space<vmem>>, vector<128x1xi32>,
    } else {
    }
    return
  }
  func.func @transform_0(%arg0: i32, %arg1: i32, %arg2: i32) -> (i32, i32) {
    %c0_i32 = arith.constant 0 : i32
    return %arg0, %arg2 : i32, i32
  }
  func.func @transform_1(%arg0: i32, %arg1: i32, %arg2: i32) -> (i32, i32) {
    %c0_i32 = arith.constant 0 : i32
    return %arg1, %arg2 : i32, i32
  }
  func.func @transform_2(%arg0: i32, %arg1: i32, %arg2: i32) -> (i32, i32) {
    %c0_i32 = arith.constant 0 : i32
    %c0_i32_0 = arith.constant 0 : i32
    return %arg0, %c0_i32 : i32, i32
  }
  func.func @transform_3(%arg0: i32, %arg1: i32, %arg2: i32) -> (i32, i32) {
    %c0_i32 = arith.constant 0 : i32
    %c0_i32_0 = arith.constant 0 : i32
    return %c0_i32, %arg1 : i32, i32
  }
  func.func @transform_4(%arg0: i32, %arg1: i32, %arg2: i32) -> (i32, i32) {
    %c0_i32 = arith.constant 0 : i32
    %c0_i32_0 = arith.constant 0 : i32
    return %arg0, %c0_i32 : i32, i32
  }
  func.func @transform_5(%arg0: i32, %arg1: i32, %arg2: i32) -> (i32, i32) {
    %c0_i32 = arith.constant 0 : i32
    %c0_i32_0 = arith.constant 0 : i32
    return %arg0, %c0_i32 : i32, i32
  }
}

</mosaic_0001>

<llo_original>
// kernel: tpu_custom_call.1
$region0: #{tpu_custom_call.1}
  #allocation0 [shape = 'u32[]', space=smem, size = 0x4, offset = 0x4, fixed_abs, tag = 'smem constant byte address 0x4 - core index']
  #allocation1 [shape = 'u32[144,128]{1,0:T(1,128)}', space=vmem, size = 0x12000, scoped, tag = 'internal scratch']
  #allocation2 [shape = 'f32[128,128]{1,0:T(8,128)}', space=vmem, size = 0x10000, scoped, tag = 'scratch operand']
  #allocation3 [shape = 'f32[128,1]{1,0:T(8,128)}', space=vmem, size = 0x10000, scoped, tag = 'scratch operand']
  #allocation4 [shape = 'f32[1,128]{1,0:T(1,128)}', space=vmem, size = 0x200, scoped, tag = 'scratch operand']
  #allocation5 [shape = 'f32[128,1]{1,0:T(8,128)}', space=vmem, size = 0x10000, scoped, tag = 'scratch operand']
  #allocation6 [shape = 's32[128,1]{1,0:T(8,128)}', space=vmem, size = 0x10000, scoped, tag = 'scratch operand']
  #allocation7 [shape = 'f32[128,1]{1,0:T(8,128)}', space=vmem, size = 0x10000, scoped, tag = 'scratch operand']
  #allocation8 [shape = 's32[128,1]{1,0:T(8,128)}', space=vmem, size = 0x10000, scoped, tag = 'scratch operand']
  %s0 = inlined_call_operand.vmem [shape: bf16[128,32], index: 0, kind: input, shape index: {}]
  %s1 = inlined_call_operand.vmem [shape: bf16[128,32], index: 1, kind: input, shape index: {}]
  %s2 = inlined_call_operand.vmem [shape: s32[128,1], index: 2, kind: input, shape index: {}]
  %s3 = inlined_call_operand.vmem [shape: s32[1,128], index: 3, kind: input, shape index: {}]
  %s4 = inlined_call_operand.vmem [shape: s32[128,1], index: 4, kind: output, shape index: {0}]
  %s5 = inlined_call_operand.vmem [shape: s32[128,1], index: 5, kind: output, shape index: {1}]
  %6 = xla_tuple %s4, %s5
  %s7 = sld [smem:[#allocation0]]
  $region50: #{tpu_custom_call.1} parent=0
    _
  %s9 = ssub.s32 1, %s7
  %s10 = scalar_select 0, %s9, %s7
  // Predicated region
  $region2: #{tpu_custom_call.1} parent=0 // pred_check
    _
  $region3: #{tpu_custom_call.1} parent=0 // pred_check_branch
    %12 = sbr.rel (0) target = $region5
  $region4: #{tpu_custom_call.1} parent=0 // pred_region
    _
  $region5: #{tpu_custom_call.1} parent=0 // pred_fallthru
    _
  // Predicated region
  $region6: #{tpu_custom_call.1} parent=0 // pred_check
    _
  $region7: #{tpu_custom_call.1} parent=0 // pred_check_branch
    %14 = sbr.rel (0) target = $region9
  $region8: #{tpu_custom_call.1} parent=0 // pred_region
    _
  $region9: #{tpu_custom_call.1} parent=0 // pred_fallthru
    _
  // Predicated region
  $region10: #{tpu_custom_call.1} parent=0 // pred_check
    _
  $region11: #{tpu_custom_call.1} parent=0 // pred_check_branch
    %16 = sbr.rel (0) target = $region13
  $region12: #{tpu_custom_call.1} parent=0 // pred_region
    _
  $region13: #{tpu_custom_call.1} parent=0 // pred_fallthru
    _
  // Predicated region
  $region14: #{tpu_custom_call.1} parent=0 // pred_check
    _
  $region15: #{tpu_custom_call.1} parent=0 // pred_check_branch
    %18 = sbr.rel (0) target = $region17
  $region16: #{tpu_custom_call.1} parent=0 // pred_region
    _
  $region17: #{tpu_custom_call.1} parent=0 // pred_fallthru
    _
  %p20 = scmp.eq.s32.totalorder 0, 0
  %p21 = scmp.eq.s32.totalorder 0, 0
  %p22 = pnand %p20, %p21
  %p23 = pneg %p22
  // Predicated region
  $region18: #{tpu_custom_call.1} parent=0 // pred_check
    _
  $region19: #{tpu_custom_call.1} parent=0 // pred_check_branch
    %25 = sbr.rel (%p22) target = $region21
  $region20: #{tpu_custom_call.1} parent=0 // pred_region
    %vm26 = vcmask 7168
    %27 = vst.msk [vmem:[#allocation5] sm:$0xff] %vm26, -inf
    %28 = vst.msk [vmem:[#allocation5 + $0x8] sm:$0xff] %vm26, -inf
    %29 = vst.msk [vmem:[#allocation5 + $0x10] sm:$0xff] %vm26, -inf
    %30 = vst.msk [vmem:[#allocation5 + $0x18] sm:$0xff] %vm26, -inf
    %31 = vst.msk [vmem:[#allocation5 + $0x20] sm:$0xff] %vm26, -inf
    %32 = vst.msk [vmem:[#allocation5 + $0x28] sm:$0xff] %vm26, -inf
    %33 = vst.msk [vmem:[#allocation5 + $0x30] sm:$0xff] %vm26, -inf
    %34 = vst.msk [vmem:[#allocation5 + $0x38] sm:$0xff] %vm26, -inf
    %35 = vst.msk [vmem:[#allocation5 + $0x40] sm:$0xff] %vm26, -inf
    %36 = vst.msk [vmem:[#allocation5 + $0x48] sm:$0xff] %vm26, -inf
    %37 = vst.msk [vmem:[#allocation5 + $0x50] sm:$0xff] %vm26, -inf
    %38 = vst.msk [vmem:[#allocation5 + $0x58] sm:$0xff] %vm26, -inf
    %39 = vst.msk [vmem:[#allocation5 + $0x60] sm:$0xff] %vm26, -inf
    %40 = vst.msk [vmem:[#allocation5 + $0x68] sm:$0xff] %vm26, -inf
    %41 = vst.msk [vmem:[#allocation5 + $0x70] sm:$0xff] %vm26, -inf
    %42 = vst.msk [vmem:[#allocation5 + $0x78] sm:$0xff] %vm26, -inf
    %43 = vst.msk [vmem:[#allocation7] sm:$0xff] %vm26, inf
    %44 = vst.msk [vmem:[#allocation7 + $0x8] sm:$0xff] %vm26, inf
    %45 = vst.msk [vmem:[#allocation7 + $0x10] sm:$0xff] %vm26, inf
    %46 = vst.msk [vmem:[#allocation7 + $0x18] sm:$0xff] %vm26, inf
    %47 = vst.msk [vmem:[#allocation7 + $0x20] sm:$0xff] %vm26, inf
    %48 = vst.msk [vmem:[#allocation7 + $0x28] sm:$0xff] %vm26, inf
    %49 = vst.msk [vmem:[#allocation7 + $0x30] sm:$0xff] %vm26, inf
    %50 = vst.msk [vmem:[#allocation7 + $0x38] sm:$0xff] %vm26, inf
    %51 = vst.msk [vmem:[#allocation7 + $0x40] sm:$0xff] %vm26, inf
    %52 = vst.msk [vmem:[#allocation7 + $0x48] sm:$0xff] %vm26, inf
    %53 = vst.msk [vmem:[#allocation7 + $0x50] sm:$0xff] %vm26, inf
    %54 = vst.msk [vmem:[#allocation7 + $0x58] sm:$0xff] %vm26, inf
    %55 = vst.msk [vmem:[#allocation7 + $0x60] sm:$0xff] %vm26, inf
    %56 = vst.msk [vmem:[#allocation7 + $0x68] sm:$0xff] %vm26, inf
    %57 = vst.msk [vmem:[#allocation7 + $0x70] sm:$0xff] %vm26, inf
    %58 = vst.msk [vmem:[#allocation7 + $0x78] sm:$0xff] %vm26, inf
    %59 = vst.msk [vmem:[#allocation6] sm:$0xff] %vm26, 0
    %60 = vst.msk [vmem:[#allocation6 + $0x8] sm:$0xff] %vm26, 0
    %61 = vst.msk [vmem:[#allocation6 + $0x10] sm:$0xff] %vm26, 0
    %62 = vst.msk [vmem:[#allocation6 + $0x18] sm:$0xff] %vm26, 0
    %63 = vst.msk [vmem:[#allocation6 + $0x20] sm:$0xff] %vm26, 0
    %64 = vst.msk [vmem:[#allocation6 + $0x28] sm:$0xff] %vm26, 0
    %65 = vst.msk [vmem:[#allocation6 + $0x30] sm:$0xff] %vm26, 0
    %66 = vst.msk [vmem:[#allocation6 + $0x38] sm:$0xff] %vm26, 0
    %67 = vst.msk [vmem:[#allocation6 + $0x40] sm:$0xff] %vm26, 0
    %68 = vst.msk [vmem:[#allocation6 + $0x48] sm:$0xff] %vm26, 0
    %69 = vst.msk [vmem:[#allocation6 + $0x50] sm:$0xff] %vm26, 0
    %70 = vst.msk [vmem:[#allocation6 + $0x58] sm:$0xff] %vm26, 0
    %71 = vst.msk [vmem:[#allocation6 + $0x60] sm:$0xff] %vm26, 0
    %72 = vst.msk [vmem:[#allocation6 + $0x68] sm:$0xff] %vm26, 0
    %73 = vst.msk [vmem:[#allocation6 + $0x70] sm:$0xff] %vm26, 0
    %74 = vst.msk [vmem:[#allocation6 + $0x78] sm:$0xff] %vm26, 0
    %75 = vst.msk [vmem:[#allocation8] sm:$0xff] %vm26, 0
    %76 = vst.msk [vmem:[#allocation8 + $0x8] sm:$0xff] %vm26, 0
    %77 = vst.msk [vmem:[#allocation8 + $0x10] sm:$0xff] %vm26, 0
    %78 = vst.msk [vmem:[#allocation8 + $0x18] sm:$0xff] %vm26, 0
    %79 = vst.msk [vmem:[#allocation8 + $0x20] sm:$0xff] %vm26, 0
    %80 = vst.msk [vmem:[#allocation8 + $0x28] sm:$0xff] %vm26, 0
    %81 = vst.msk [vmem:[#allocation8 + $0x30] sm:$0xff] %vm26, 0
    %82 = vst.msk [vmem:[#allocation8 + $0x38] sm:$0xff] %vm26, 0
    %83 = vst.msk [vmem:[#allocation8 + $0x40] sm:$0xff] %vm26, 0
    %84 = vst.msk [vmem:[#allocation8 + $0x48] sm:$0xff] %vm26, 0
    %85 = vst.msk [vmem:[#allocation8 + $0x50] sm:$0xff] %vm26, 0
    %86 = vst.msk [vmem:[#allocation8 + $0x58] sm:$0xff] %vm26, 0
    %87 = vst.msk [vmem:[#allocation8 + $0x60] sm:$0xff] %vm26, 0
    %88 = vst.msk [vmem:[#allocation8 + $0x68] sm:$0xff] %vm26, 0
    %89 = vst.msk [vmem:[#allocation8 + $0x70] sm:$0xff] %vm26, 0
    %90 = vst.msk [vmem:[#allocation8 + $0x78] sm:$0xff] %vm26, 0
  $region21: #{tpu_custom_call.1} parent=0 // pred_fallthru
    _
  // Predicated region
  $region22: #{tpu_custom_call.1} parent=0 // pred_check
    %p91 = pneg %p21
  $region23: #{tpu_custom_call.1} parent=0 // pred_check_branch
    %93 = sbr.rel (%p91) target = $region25
  $region24: #{tpu_custom_call.1} parent=0 // pred_region
    %94 = vst [vmem:[#allocation2] sm:$0xff] 0.0
    %95 = vst [vmem:[#allocation2 + $0x8] sm:$0xff] 0.0
    %96 = vst [vmem:[#allocation2 + $0x10] sm:$0xff] 0.0
    %97 = vst [vmem:[#allocation2 + $0x18] sm:$0xff] 0.0
    %98 = vst [vmem:[#allocation2 + $0x20] sm:$0xff] 0.0
    %99 = vst [vmem:[#allocation2 + $0x28] sm:$0xff] 0.0
    %100 = vst [vmem:[#allocation2 + $0x30] sm:$0xff] 0.0
    %101 = vst [vmem:[#allocation2 + $0x38] sm:$0xff] 0.0
    %102 = vst [vmem:[#allocation2 + $0x40] sm:$0xff] 0.0
    %103 = vst [vmem:[#allocation2 + $0x48] sm:$0xff] 0.0
    %104 = vst [vmem:[#allocation2 + $0x50] sm:$0xff] 0.0
    %105 = vst [vmem:[#allocation2 + $0x58] sm:$0xff] 0.0
    %106 = vst [vmem:[#allocation2 + $0x60] sm:$0xff] 0.0
    %107 = vst [vmem:[#allocation2 + $0x68] sm:$0xff] 0.0
    %108 = vst [vmem:[#allocation2 + $0x70] sm:$0xff] 0.0
    %109 = vst [vmem:[#allocation2 + $0x78] sm:$0xff] 0.0
    %vm110 = vcmask 7168
    %111 = vst.msk [vmem:[#allocation3] sm:$0xff] %vm110, 0.0
    %112 = vst.msk [vmem:[#allocation3 + $0x8] sm:$0xff] %vm110, 0.0
    %113 = vst.msk [vmem:[#allocation3 + $0x10] sm:$0xff] %vm110, 0.0
    %114 = vst.msk [vmem:[#allocation3 + $0x18] sm:$0xff] %vm110, 0.0
    %115 = vst.msk [vmem:[#allocation3 + $0x20] sm:$0xff] %vm110, 0.0
    %116 = vst.msk [vmem:[#allocation3 + $0x28] sm:$0xff] %vm110, 0.0
    %117 = vst.msk [vmem:[#allocation3 + $0x30] sm:$0xff] %vm110, 0.0
    %118 = vst.msk [vmem:[#allocation3 + $0x38] sm:$0xff] %vm110, 0.0
    %119 = vst.msk [vmem:[#allocation3 + $0x40] sm:$0xff] %vm110, 0.0
    %120 = vst.msk [vmem:[#allocation3 + $0x48] sm:$0xff] %vm110, 0.0
    %121 = vst.msk [vmem:[#allocation3 + $0x50] sm:$0xff] %vm110, 0.0
    %122 = vst.msk [vmem:[#allocation3 + $0x58] sm:$0xff] %vm110, 0.0
    %123 = vst.msk [vmem:[#allocation3 + $0x60] sm:$0xff] %vm110, 0.0
    %124 = vst.msk [vmem:[#allocation3 + $0x68] sm:$0xff] %vm110, 0.0
    %125 = vst.msk [vmem:[#allocation3 + $0x70] sm:$0xff] %vm110, 0.0
    %126 = vst.msk [vmem:[#allocation3 + $0x78] sm:$0xff] %vm110, 0.0
    %127 = vst [vmem:[#allocation4] sm:$0x1] 0.0
  $region25: #{tpu_custom_call.1} parent=0 // pred_fallthru
    _
  %v128 = vld [vmem:[%s0] sm:$0xf]
  %v129 = vld [vmem:[%s0 + $0x4] sm:$0xf]
  %v130 = vld [vmem:[%s0 + $0x8] sm:$0xf]
  %v131 = vld [vmem:[%s0 + $0xc] sm:$0xf]
  %v132 = vld [vmem:[%s0 + $0x10] sm:$0xf]
  %v133 = vld [vmem:[%s0 + $0x14] sm:$0xf]
  %v134 = vld [vmem:[%s0 + $0x18] sm:$0xf]
  %v135 = vld [vmem:[%s0 + $0x1c] sm:$0xf]
  %v136 = vld [vmem:[%s0 + $0x20] sm:$0xf]
  %v137 = vld [vmem:[%s0 + $0x24] sm:$0xf]
  %v138 = vld [vmem:[%s0 + $0x28] sm:$0xf]
  %v139 = vld [vmem:[%s0 + $0x2c] sm:$0xf]
  %v140 = vld [vmem:[%s0 + $0x30] sm:$0xf]
  %v141 = vld [vmem:[%s0 + $0x34] sm:$0xf]
  %v142 = vld [vmem:[%s0 + $0x38] sm:$0xf]
  %v143 = vld [vmem:[%s0 + $0x3c] sm:$0xf]
  %v144 = vld [vmem:[%s1] sm:$0xf]
  %v145 = vld [vmem:[%s1 + $0x4] sm:$0xf]
  %v146 = vld [vmem:[%s1 + $0x8] sm:$0xf]
  %v147 = vld [vmem:[%s1 + $0xc] sm:$0xf]
  %v148 = vld [vmem:[%s1 + $0x10] sm:$0xf]
  %v149 = vld [vmem:[%s1 + $0x14] sm:$0xf]
  %v150 = vld [vmem:[%s1 + $0x18] sm:$0xf]
  %v151 = vld [vmem:[%s1 + $0x1c] sm:$0xf]
  %v152 = vld [vmem:[%s1 + $0x20] sm:$0xf]
  %v153 = vld [vmem:[%s1 + $0x24] sm:$0xf]
  %v154 = vld [vmem:[%s1 + $0x28] sm:$0xf]
  %v155 = vld [vmem:[%s1 + $0x2c] sm:$0xf]
  %v156 = vld [vmem:[%s1 + $0x30] sm:$0xf]
  %v157 = vld [vmem:[%s1 + $0x34] sm:$0xf]
  %v158 = vld [vmem:[%s1 + $0x38] sm:$0xf]
  %v159 = vld [vmem:[%s1 + $0x3c] sm:$0xf]
  %v160 = vld [vmem:[#allocation2] sm:$0xff]
  %v161 = vld [vmem:[#allocation2 + $0x8] sm:$0xff]
  %v162 = vld [vmem:[#allocation2 + $0x10] sm:$0xff]
  %v163 = vld [vmem:[#allocation2 + $0x18] sm:$0xff]
  %v164 = vld [vmem:[#allocation2 + $0x20] sm:$0xff]
  %v165 = vld [vmem:[#allocation2 + $0x28] sm:$0xff]
  %v166 = vld [vmem:[#allocation2 + $0x30] sm:$0xff]
  %v167 = vld [vmem:[#allocation2 + $0x38] sm:$0xff]
  %v168 = vld [vmem:[#allocation2 + $0x40] sm:$0xff]
  %v169 = vld [vmem:[#allocation2 + $0x48] sm:$0xff]
  %v170 = vld [vmem:[#allocation2 + $0x50] sm:$0xff]
  %v171 = vld [vmem:[#allocation2 + $0x58] sm:$0xff]
  %v172 = vld [vmem:[#allocation2 + $0x60] sm:$0xff]
  %v173 = vld [vmem:[#allocation2 + $0x68] sm:$0xff]
  %v174 = vld [vmem:[#allocation2 + $0x70] sm:$0xff]
  %v175 = vld [vmem:[#allocation2 + $0x78] sm:$0xff]
  %v192 = vunpack.c.l.b16 %v128
  %v193 = vunpack.c.l.b16 %v129
  %v194 = vunpack.c.l.b16 %v130
  %v195 = vunpack.c.l.b16 %v131
  %v196 = vunpack.c.l.b16 %v132
  %v197 = vunpack.c.l.b16 %v133
  %v198 = vunpack.c.l.b16 %v134
  %v199 = vunpack.c.l.b16 %v135
  %v200 = vunpack.c.l.b16 %v136
  %v201 = vunpack.c.l.b16 %v137
  %v202 = vunpack.c.l.b16 %v138
  %v203 = vunpack.c.l.b16 %v139
  %v204 = vunpack.c.l.b16 %v140
  %v205 = vunpack.c.l.b16 %v141
  %v206 = vunpack.c.l.b16 %v142
  %v207 = vunpack.c.l.b16 %v143
  %v208 = vpack.c.b16 %v193, %v192
  %v209 = vpack.c.b16 %v195, %v194
  %v210 = vpack.c.b16 %v197, %v196
  %v211 = vpack.c.b16 %v199, %v198
  %v212 = vpack.c.b16 %v201, %v200
  %v213 = vpack.c.b16 %v203, %v202
  %v214 = vpack.c.b16 %v205, %v204
  %v215 = vpack.c.b16 %v207, %v206
  %v232 = vunpack.c.l.b16 %v144
  %v233 = vunpack.c.l.b16 %v145
  %v234 = vunpack.c.l.b16 %v146
  %v235 = vunpack.c.l.b16 %v147
  %v236 = vunpack.c.l.b16 %v148
  %v237 = vunpack.c.l.b16 %v149
  %v238 = vunpack.c.l.b16 %v150
  %v239 = vunpack.c.l.b16 %v151
  %v240 = vunpack.c.l.b16 %v152
  %v241 = vunpack.c.l.b16 %v153
  %v242 = vunpack.c.l.b16 %v154
  %v243 = vunpack.c.l.b16 %v155
  %v244 = vunpack.c.l.b16 %v156
  %v245 = vunpack.c.l.b16 %v157
  %v246 = vunpack.c.l.b16 %v158
  %v247 = vunpack.c.l.b16 %v159
  %v248 = vpack.c.b16 %v233, %v232
  %v249 = vpack.c.b16 %v235, %v234
  %v250 = vpack.c.b16 %v237, %v236
  %v251 = vpack.c.b16 %v239, %v238
  %v252 = vpack.c.b16 %v241, %v240
  %v253 = vpack.c.b16 %v243, %v242
  %v254 = vpack.c.b16 %v245, %v244
  %v255 = vpack.c.b16 %v247, %v246
  %vm256 = vcmask 261120
  %v258 = vsel %vm256, %v208, 0
  %v261 = vsel %vm256, %v209, 0
  %v264 = vsel %vm256, %v210, 0
  %v267 = vsel %vm256, %v211, 0
  %v270 = vsel %vm256, %v212, 0
  %v273 = vsel %vm256, %v213, 0
  %v276 = vsel %vm256, %v214, 0
  %v279 = vsel %vm256, %v215, 0
  %v282 = vsel %vm256, %v248, 0
  %v285 = vsel %vm256, %v249, 0
  %v288 = vsel %vm256, %v250, 0
  %v291 = vsel %vm256, %v251, 0
  %v294 = vsel %vm256, %v252, 0
  %v297 = vsel %vm256, %v253, 0
  %v300 = vsel %vm256, %v254, 0
  %v303 = vsel %vm256, %v255, 0
  %305 = vmatprep.subr.bf16.mxu0 0
  %306 = vmatpush1.bf16.xpose.msra.mxu0 %v282
  %307 = vmatprep.subr.bf16.mxu0 0
  %308 = vmatpush1.bf16.xpose.msra.mxu0 %v285
  %309 = vmatprep.subr.bf16.mxu0 0
  %310 = vmatpush1.bf16.xpose.msra.mxu0 %v288
  %311 = vmatprep.subr.bf16.mxu0 0
  %312 = vmatpush1.bf16.xpose.msra.mxu0 %v291
  %313 = vmatprep.subr.bf16.mxu0 0
  %314 = vmatpush1.bf16.xpose.msra.mxu0 %v294
  %315 = vmatprep.subr.bf16.mxu0 0
  %316 = vmatpush1.bf16.xpose.msra.mxu0 %v297
  %317 = vmatprep.subr.bf16.mxu0 0
  %318 = vmatpush1.bf16.xpose.msra.mxu0 %v300
  %319 = vmatprep.subr.bf16.mxu0 0
  %320 = vmatpush1.bf16.xpose.msra.mxu0 %v303
  %321 = vmatprep.subr.bf16.mxu0 0
  %322 = vmatpush1.bf16.xpose.msra.mxu0 0
  %323 = vmatprep.subr.bf16.mxu0 0
  %324 = vmatpush1.bf16.xpose.msra.mxu0 0
  %325 = vmatprep.subr.bf16.mxu0 0
  %326 = vmatpush1.bf16.xpose.msra.mxu0 0
  %327 = vmatprep.subr.bf16.mxu0 0
  %328 = vmatpush1.bf16.xpose.msra.mxu0 0
  %329 = vmatprep.subr.bf16.mxu0 0
  %330 = vmatpush1.bf16.xpose.msra.mxu0 0
  %331 = vmatprep.subr.bf16.mxu0 0
  %332 = vmatpush1.bf16.xpose.msra.mxu0 0
  %333 = vmatprep.subr.bf16.mxu0 0
  %334 = vmatpush1.bf16.xpose.msra.mxu0 0
  %335 = vmatprep.subr.bf16.mxu0 0
  %336 = vmatpush1.bf16.xpose.msra.mxu0 0
  %337 = vmatprep.mubr.bf16.mxu0 0
  %338 = vmatmul.mubr.bf16.gmra.mrb[0].mxu0 %v258
  %v339 = vpop.f32.mrb[0].mxu0
  %v340 = vadd.f32 0.0, %v339
  %v341 = vpop.f32.mrb[0].mxu0
  %v342 = vpop.f32.mrb[0].mxu0
  %v343 = vadd.f32 0.0, %v342
  %v344 = vpop.f32.mrb[0].mxu0
  %345 = vmatprep.mubr.bf16.mxu0 0
  %346 = vmatmul.mubr.bf16.gmra.mrb[0].mxu0 %v261
  %v347 = vpop.f32.mrb[0].mxu0
  %v348 = vadd.f32 0.0, %v347
  %v349 = vpop.f32.mrb[0].mxu0
  %v350 = vpop.f32.mrb[0].mxu0
  %v351 = vadd.f32 0.0, %v350
  %v352 = vpop.f32.mrb[0].mxu0
  %353 = vmatprep.mubr.bf16.mxu0 0
  %354 = vmatmul.mubr.bf16.gmra.mrb[0].mxu0 %v264
  %v355 = vpop.f32.mrb[0].mxu0
  %v356 = vadd.f32 0.0, %v355
  %v357 = vpop.f32.mrb[0].mxu0
  %v358 = vpop.f32.mrb[0].mxu0
  %v359 = vadd.f32 0.0, %v358
  %v360 = vpop.f32.mrb[0].mxu0
  %361 = vmatprep.mubr.bf16.mxu0 0
  %362 = vmatmul.mubr.bf16.gmra.mrb[0].mxu0 %v267
  %v363 = vpop.f32.mrb[0].mxu0
  %v364 = vadd.f32 0.0, %v363
  %v365 = vpop.f32.mrb[0].mxu0
  %v366 = vpop.f32.mrb[0].mxu0
  %v367 = vadd.f32 0.0, %v366
  %v368 = vpop.f32.mrb[0].mxu0
  %369 = vmatprep.mubr.bf16.mxu0 0
  %370 = vmatmul.mubr.bf16.gmra.mrb[0].mxu0 %v270
  %v371 = vpop.f32.mrb[0].mxu0
  %v372 = vadd.f32 0.0, %v371
  %v373 = vpop.f32.mrb[0].mxu0
  %v374 = vpop.f32.mrb[0].mxu0
  %v375 = vadd.f32 0.0, %v374
  %v376 = vpop.f32.mrb[0].mxu0
  %377 = vmatprep.mubr.bf16.mxu0 0
  %378 = vmatmul.mubr.bf16.gmra.mrb[0].mxu0 %v273
  %v379 = vpop.f32.mrb[0].mxu0
  %v380 = vadd.f32 0.0, %v379
  %v381 = vpop.f32.mrb[0].mxu0
  %v382 = vpop.f32.mrb[0].mxu0
  %v383 = vadd.f32 0.0, %v382
  %v384 = vpop.f32.mrb[0].mxu0
  %385 = vmatprep.mubr.bf16.mxu0 0
  %386 = vmatmul.mubr.bf16.gmra.mrb[0].mxu0 %v276
  %v387 = vpop.f32.mrb[0].mxu0
  %v388 = vadd.f32 0.0, %v387
  %v389 = vpop.f32.mrb[0].mxu0
  %v390 = vpop.f32.mrb[0].mxu0
  %v391 = vadd.f32 0.0, %v390
  %v392 = vpop.f32.mrb[0].mxu0
  %393 = vmatprep.mubr.bf16.mxu0 0
  %394 = vmatmul.mubr.bf16.gmra.mrb[0].mxu0 %v279
  %v395 = vpop.f32.mrb[0].mxu0
  %v396 = vadd.f32 0.0, %v395
  %v397 = vpop.f32.mrb[0].mxu0
  %v398 = vpop.f32.mrb[0].mxu0
  %v399 = vadd.f32 0.0, %v398
  %v400 = vpop.f32.mrb[0].mxu0
  %401 = vdwg.mxu0
  %v402 = vadd.f32 %v160, %v340
  %v403 = vadd.f32 %v161, %v343
  %v404 = vadd.f32 %v162, %v348
  %v405 = vadd.f32 %v163, %v351
  %v406 = vadd.f32 %v164, %v356
  %v407 = vadd.f32 %v165, %v359
  %v408 = vadd.f32 %v166, %v364
  %v409 = vadd.f32 %v167, %v367
  %v410 = vadd.f32 %v168, %v372
  %v411 = vadd.f32 %v169, %v375
  %v412 = vadd.f32 %v170, %v380
  %v413 = vadd.f32 %v171, %v383
  %v414 = vadd.f32 %v172, %v388
  %v415 = vadd.f32 %v173, %v391
  %v416 = vadd.f32 %v174, %v396
  %v417 = vadd.f32 %v175, %v399
  %418 = vst [vmem:[#allocation2] sm:$0xff] %v402
  %419 = vst [vmem:[#allocation2 + $0x8] sm:$0xff] %v403
  %420 = vst [vmem:[#allocation2 + $0x10] sm:$0xff] %v404
  %421 = vst [vmem:[#allocation2 + $0x18] sm:$0xff] %v405
  %422 = vst [vmem:[#allocation2 + $0x20] sm:$0xff] %v406
  %423 = vst [vmem:[#allocation2 + $0x28] sm:$0xff] %v407
  %424 = vst [vmem:[#allocation2 + $0x30] sm:$0xff] %v408
  %425 = vst [vmem:[#allocation2 + $0x38] sm:$0xff] %v409
  %426 = vst [vmem:[#allocation2 + $0x40] sm:$0xff] %v410
  %427 = vst [vmem:[#allocation2 + $0x48] sm:$0xff] %v411
  %428 = vst [vmem:[#allocation2 + $0x50] sm:$0xff] %v412
  %429 = vst [vmem:[#allocation2 + $0x58] sm:$0xff] %v413
  %430 = vst [vmem:[#allocation2 + $0x60] sm:$0xff] %v414
  %431 = vst [vmem:[#allocation2 + $0x68] sm:$0xff] %v415
  %432 = vst [vmem:[#allocation2 + $0x70] sm:$0xff] %v416
  %433 = vst [vmem:[#allocation2 + $0x78] sm:$0xff] %v417
  %v434 = vunpack.c.l.bf16 %v128
  %v435 = vunpack.c.l.bf16 %v129
  %v436 = vunpack.c.l.bf16 %v130
  %v437 = vunpack.c.l.bf16 %v131
  %v438 = vunpack.c.l.bf16 %v132
  %v439 = vunpack.c.l.bf16 %v133
  %v440 = vunpack.c.l.bf16 %v134
  %v441 = vunpack.c.l.bf16 %v135
  %v442 = vunpack.c.l.bf16 %v136
  %v443 = vunpack.c.l.bf16 %v137
  %v444 = vunpack.c.l.bf16 %v138
  %v445 = vunpack.c.l.bf16 %v139
  %v446 = vunpack.c.l.bf16 %v140
  %v447 = vunpack.c.l.bf16 %v141
  %v448 = vunpack.c.l.bf16 %v142
  %v449 = vunpack.c.l.bf16 %v143
  %v450 = vunpack.c.l.bf16 %v144
  %v451 = vunpack.c.l.bf16 %v145
  %v452 = vunpack.c.l.bf16 %v146
  %v453 = vunpack.c.l.bf16 %v147
  %v454 = vunpack.c.l.bf16 %v148
  %v455 = vunpack.c.l.bf16 %v149
  %v456 = vunpack.c.l.bf16 %v150
  %v457 = vunpack.c.l.bf16 %v151
  %v458 = vunpack.c.l.bf16 %v152
  %v459 = vunpack.c.l.bf16 %v153
  %v460 = vunpack.c.l.bf16 %v154
  %v461 = vunpack.c.l.bf16 %v155
  %v462 = vunpack.c.l.bf16 %v156
  %v463 = vunpack.c.l.bf16 %v157
  %v464 = vunpack.c.l.bf16 %v158
  %v465 = vunpack.c.l.bf16 %v159
  %v466 = vld [vmem:[#allocation3] sm:$0xff]
  %v467 = vld [vmem:[#allocation3 + $0x8] sm:$0xff]
  %v468 = vld [vmem:[#allocation3 + $0x10] sm:$0xff]
  %v469 = vld [vmem:[#allocation3 + $0x18] sm:$0xff]
  %v470 = vld [vmem:[#allocation3 + $0x20] sm:$0xff]
  %v471 = vld [vmem:[#allocation3 + $0x28] sm:$0xff]
  %v472 = vld [vmem:[#allocation3 + $0x30] sm:$0xff]
  %v473 = vld [vmem:[#allocation3 + $0x38] sm:$0xff]
  %v474 = vld [vmem:[#allocation3 + $0x40] sm:$0xff]
  %v475 = vld [vmem:[#allocation3 + $0x48] sm:$0xff]
  %v476 = vld [vmem:[#allocation3 + $0x50] sm:$0xff]
  %v477 = vld [vmem:[#allocation3 + $0x58] sm:$0xff]
  %v478 = vld [vmem:[#allocation3 + $0x60] sm:$0xff]
  %v479 = vld [vmem:[#allocation3 + $0x68] sm:$0xff]
  %v480 = vld [vmem:[#allocation3 + $0x70] sm:$0xff]
  %v481 = vld [vmem:[#allocation3 + $0x78] sm:$0xff]
  %v482 = vmul.f32 %v434, %v434
  %v483 = vmul.f32 %v435, %v435
  %v484 = vmul.f32 %v436, %v436
  %v485 = vmul.f32 %v437, %v437
  %v486 = vmul.f32 %v438, %v438
  %v487 = vmul.f32 %v439, %v439
  %v488 = vmul.f32 %v440, %v440
  %v489 = vmul.f32 %v441, %v441
  %v490 = vmul.f32 %v442, %v442
  %v491 = vmul.f32 %v443, %v443
  %v492 = vmul.f32 %v444, %v444
  %v493 = vmul.f32 %v445, %v445
  %v494 = vmul.f32 %v446, %v446
  %v495 = vmul.f32 %v447, %v447
  %v496 = vmul.f32 %v448, %v448
  %v497 = vmul.f32 %v449, %v449
  %v498 = vsel %vm256, %v482, 0.0
  %499 = vadd.xlane.f32.xlu0 %v498
  %v500 = vpop.xlane.xlu0 %499
  %v501 = vsel %vm256, %v483, 0.0
  %502 = vadd.xlane.f32.xlu0 %v501
  %v503 = vpop.xlane.xlu0 %502
  %v504 = vsel %vm256, %v484, 0.0
  %505 = vadd.xlane.f32.xlu0 %v504
  %v506 = vpop.xlane.xlu0 %505
  %v507 = vsel %vm256, %v485, 0.0
  %508 = vadd.xlane.f32.xlu0 %v507
  %v509 = vpop.xlane.xlu0 %508
  %v510 = vsel %vm256, %v486, 0.0
  %511 = vadd.xlane.f32.xlu0 %v510
  %v512 = vpop.xlane.xlu0 %511
  %v513 = vsel %vm256, %v487, 0.0
  %514 = vadd.xlane.f32.xlu0 %v513
  %v515 = vpop.xlane.xlu0 %514
  %v516 = vsel %vm256, %v488, 0.0
  %517 = vadd.xlane.f32.xlu0 %v516
  %v518 = vpop.xlane.xlu0 %517
  %v519 = vsel %vm256, %v489, 0.0
  %520 = vadd.xlane.f32.xlu0 %v519
  %v521 = vpop.xlane.xlu0 %520
  %v522 = vsel %vm256, %v490, 0.0
  %523 = vadd.xlane.f32.xlu0 %v522
  %v524 = vpop.xlane.xlu0 %523
  %v525 = vsel %vm256, %v491, 0.0
  %526 = vadd.xlane.f32.xlu0 %v525
  %v527 = vpop.xlane.xlu0 %526
  %v528 = vsel %vm256, %v492, 0.0
  %529 = vadd.xlane.f32.xlu0 %v528
  %v530 = vpop.xlane.xlu0 %529
  %v531 = vsel %vm256, %v493, 0.0
  %532 = vadd.xlane.f32.xlu0 %v531
  %v533 = vpop.xlane.xlu0 %532
  %v534 = vsel %vm256, %v494, 0.0
  %535 = vadd.xlane.f32.xlu0 %v534
  %v536 = vpop.xlane.xlu0 %535
  %v537 = vsel %vm256, %v495, 0.0
  %538 = vadd.xlane.f32.xlu0 %v537
  %v539 = vpop.xlane.xlu0 %538
  %v540 = vsel %vm256, %v496, 0.0
  %541 = vadd.xlane.f32.xlu0 %v540
  %v542 = vpop.xlane.xlu0 %541
  %v543 = vsel %vm256, %v497, 0.0
  %544 = vadd.xlane.f32.xlu0 %v543
  %v545 = vpop.xlane.xlu0 %544
  %v546 = vadd.f32 %v466, %v500
  %v547 = vadd.f32 %v467, %v503
  %v548 = vadd.f32 %v468, %v506
  %v549 = vadd.f32 %v469, %v509
  %v550 = vadd.f32 %v470, %v512
  %v551 = vadd.f32 %v471, %v515
  %v552 = vadd.f32 %v472, %v518
  %v553 = vadd.f32 %v473, %v521
  %v554 = vadd.f32 %v474, %v524
  %v555 = vadd.f32 %v475, %v527
  %v556 = vadd.f32 %v476, %v530
  %v557 = vadd.f32 %v477, %v533
  %v558 = vadd.f32 %v478, %v536
  %v559 = vadd.f32 %v479, %v539
  %v560 = vadd.f32 %v480, %v542
  %v561 = vadd.f32 %v481, %v545
  %vm562 = vcmask 7168
  %563 = vst.msk [vmem:[#allocation3] sm:$0xff] %vm562, %v546
  %564 = vst.msk [vmem:[#allocation3 + $0x8] sm:$0xff] %vm562, %v547
  %565 = vst.msk [vmem:[#allocation3 + $0x10] sm:$0xff] %vm562, %v548
  %566 = vst.msk [vmem:[#allocation3 + $0x18] sm:$0xff] %vm562, %v549
  %567 = vst.msk [vmem:[#allocation3 + $0x20] sm:$0xff] %vm562, %v550
  %568 = vst.msk [vmem:[#allocation3 + $0x28] sm:$0xff] %vm562, %v551
  %569 = vst.msk [vmem:[#allocation3 + $0x30] sm:$0xff] %vm562, %v552
  %570 = vst.msk [vmem:[#allocation3 + $0x38] sm:$0xff] %vm562, %v553
  %571 = vst.msk [vmem:[#allocation3 + $0x40] sm:$0xff] %vm562, %v554
  %572 = vst.msk [vmem:[#allocation3 + $0x48] sm:$0xff] %vm562, %v555
  %573 = vst.msk [vmem:[#allocation3 + $0x50] sm:$0xff] %vm562, %v556
  %574 = vst.msk [vmem:[#allocation3 + $0x58] sm:$0xff] %vm562, %v557
  %575 = vst.msk [vmem:[#allocation3 + $0x60] sm:$0xff] %vm562, %v558
  %576 = vst.msk [vmem:[#allocation3 + $0x68] sm:$0xff] %vm562, %v559
  %577 = vst.msk [vmem:[#allocation3 + $0x70] sm:$0xff] %vm562, %v560
  %578 = vst.msk [vmem:[#allocation3 + $0x78] sm:$0xff] %vm562, %v561
  %v579 = vld [vmem:[#allocation4] sm:$0x1]
  %v580 = vmul.f32 %v450, %v450
  %v581 = vmul.f32 %v451, %v451
  %v582 = vmul.f32 %v452, %v452
  %v583 = vmul.f32 %v453, %v453
  %v584 = vmul.f32 %v454, %v454
  %v585 = vmul.f32 %v455, %v455
  %v586 = vmul.f32 %v456, %v456
  %v587 = vmul.f32 %v457, %v457
  %v588 = vmul.f32 %v458, %v458
  %v589 = vmul.f32 %v459, %v459
  %v590 = vmul.f32 %v460, %v460
  %v591 = vmul.f32 %v461, %v461
  %v592 = vmul.f32 %v462, %v462
  %v593 = vmul.f32 %v463, %v463
  %v594 = vmul.f32 %v464, %v464
  %v595 = vmul.f32 %v465, %v465
  %v597 = vsel %vm256, 1.0, 0
  %v600 = vsel %vm256, %v580, 0
  %v603 = vsel %vm256, %v581, 0
  %v606 = vsel %vm256, %v582, 0
  %v609 = vsel %vm256, %v583, 0
  %v612 = vsel %vm256, %v584, 0
  %v615 = vsel %vm256, %v585, 0
  %v618 = vsel %vm256, %v586, 0
  %v621 = vsel %vm256, %v587, 0
  %v624 = vsel %vm256, %v588, 0
  %v627 = vsel %vm256, %v589, 0
  %v630 = vsel %vm256, %v590, 0
  %v633 = vsel %vm256, %v591, 0
  %v636 = vsel %vm256, %v592, 0
  %v639 = vsel %vm256, %v593, 0
  %v642 = vsel %vm256, %v594, 0
  %v645 = vsel %vm256, %v595, 0
  %647 = vmatprep.subr.mxu0 0.0
  %648 = vmatpush1.xpose.msra.mxu0 %v600
  %649 = vmatprep.subr.mxu0 0.0
  %650 = vmatpush1.xpose.msra.mxu0 %v603
  %651 = vmatprep.subr.mxu0 0.0
  %652 = vmatpush1.xpose.msra.mxu0 %v606
  %653 = vmatprep.subr.mxu0 0.0
  %654 = vmatpush1.xpose.msra.mxu0 %v609
  %655 = vmatprep.subr.mxu0 0.0
  %656 = vmatpush1.xpose.msra.mxu0 %v612
  %657 = vmatprep.subr.mxu0 0.0
  %658 = vmatpush1.xpose.msra.mxu0 %v615
  %659 = vmatprep.subr.mxu0 0.0
  %660 = vmatpush1.xpose.msra.mxu0 %v618
  %661 = vmatprep.subr.mxu0 0.0
  %662 = vmatpush1.xpose.msra.mxu0 %v621
  %663 = vmatprep.subr.mxu0 0.0
  %664 = vmatpush1.xpose.msra.mxu0 %v624
  %665 = vmatprep.subr.mxu0 0.0
  %666 = vmatpush1.xpose.msra.mxu0 %v627
  %667 = vmatprep.subr.mxu0 0.0
  %668 = vmatpush1.xpose.msra.mxu0 %v630
  %669 = vmatprep.subr.mxu0 0.0
  %670 = vmatpush1.xpose.msra.mxu0 %v633
  %671 = vmatprep.subr.mxu0 0.0
  %672 = vmatpush1.xpose.msra.mxu0 %v636
  %673 = vmatprep.subr.mxu0 0.0
  %674 = vmatpush1.xpose.msra.mxu0 %v639
  %675 = vmatprep.subr.mxu0 0.0
  %676 = vmatpush1.xpose.msra.mxu0 %v642
  %677 = vmatprep.subr.mxu0 0.0
  %678 = vmatpush1.xpose.msra.mxu0 %v645
  %679 = vmatprep.subr.mxu0 0.0
  %680 = vmatpush1.xpose.msra.mxu0 0.0
  %681 = vmatprep.subr.mxu0 0.0
  %682 = vmatpush1.xpose.msra.mxu0 0.0
  %683 = vmatprep.subr.mxu0 0.0
  %684 = vmatpush1.xpose.msra.mxu0 0.0
  %685 = vmatprep.subr.mxu0 0.0
  %686 = vmatpush1.xpose.msra.mxu0 0.0
  %687 = vmatprep.subr.mxu0 0.0
  %688 = vmatpush1.xpose.msra.mxu0 0.0
  %689 = vmatprep.subr.mxu0 0.0
  %690 = vmatpush1.xpose.msra.mxu0 0.0
  %691 = vmatprep.subr.mxu0 0.0
  %692 = vmatpush1.xpose.msra.mxu0 0.0
  %693 = vmatprep.subr.mxu0 0.0
  %694 = vmatpush1.xpose.msra.mxu0 0.0
  %695 = vmatprep.subr.mxu0 0.0
  %696 = vmatpush1.xpose.msra.mxu0 0.0
  %697 = vmatprep.subr.mxu0 0.0
  %698 = vmatpush1.xpose.msra.mxu0 0.0
  %699 = vmatprep.subr.mxu0 0.0
  %700 = vmatpush1.xpose.msra.mxu0 0.0
  %701 = vmatprep.subr.mxu0 0.0
  %702 = vmatpush1.xpose.msra.mxu0 0.0
  %703 = vmatprep.subr.mxu0 0.0
  %704 = vmatpush1.xpose.msra.mxu0 0.0
  %705 = vmatprep.subr.mxu0 0.0
  %706 = vmatpush1.xpose.msra.mxu0 0.0
  %707 = vmatprep.subr.mxu0 0.0
  %708 = vmatpush1.xpose.msra.mxu0 0.0
  %709 = vmatprep.subr.mxu0 0.0
  %710 = vmatpush1.xpose.msra.mxu0 0.0
  %711 = vmatprep.mubr.f32.mxu0 0.0
  %712 = vmatmul.mubr.f32.gmra.mrb[0].mxu0 %v597
  %v713 = vpop.f32.mrb[0].mxu0
  %v714 = vadd.f32 0.0, %v713
  %v715 = vpop.f32.mrb[0].mxu0
  %716 = vdwg.mxu0
  %v717 = vadd.f32 %v579, %v714
  %718 = vst [vmem:[#allocation4] sm:$0x1] %v717
  // Predicated region
  $region26: #{tpu_custom_call.1} parent=0 // pred_check
    %p719 = pneg %p21
  $region27: #{tpu_custom_call.1} parent=0 // pred_check_branch
    %721 = sbr.rel (%p719) target = $region29
  $region28: #{tpu_custom_call.1} parent=0 // pred_region
    %v722 = vld [vmem:[#allocation3] sm:$0xff]
    %v723 = vld [vmem:[#allocation3 + $0x8] sm:$0xff]
    %v724 = vld [vmem:[#allocation3 + $0x10] sm:$0xff]
    %v725 = vld [vmem:[#allocation3 + $0x18] sm:$0xff]
    %v726 = vld [vmem:[#allocation3 + $0x20] sm:$0xff]
    %v727 = vld [vmem:[#allocation3 + $0x28] sm:$0xff]
    %v728 = vld [vmem:[#allocation3 + $0x30] sm:$0xff]
    %v729 = vld [vmem:[#allocation3 + $0x38] sm:$0xff]
    %v730 = vld [vmem:[#allocation3 + $0x40] sm:$0xff]
    %v731 = vld [vmem:[#allocation3 + $0x48] sm:$0xff]
    %v732 = vld [vmem:[#allocation3 + $0x50] sm:$0xff]
    %v733 = vld [vmem:[#allocation3 + $0x58] sm:$0xff]
    %v734 = vld [vmem:[#allocation3 + $0x60] sm:$0xff]
    %v735 = vld [vmem:[#allocation3 + $0x68] sm:$0xff]
    %v736 = vld [vmem:[#allocation3 + $0x70] sm:$0xff]
    %v737 = vld [vmem:[#allocation3 + $0x78] sm:$0xff]
    %v738 = vld [vmem:[#allocation4] sm:$0x1]
    %740 = vset.pattern.permute.xlu0 0
    %741 = vperm.xlu0 %740, %v722
    %v742 = vpop.permute.xlu0 %741
    %745 = vset.pattern.permute.xlu0 0
    %746 = vperm.xlu0 %745, %v723
    %v747 = vpop.permute.xlu0 %746
    %750 = vset.pattern.permute.xlu0 0
    %751 = vperm.xlu0 %750, %v724
    %v752 = vpop.permute.xlu0 %751
    %755 = vset.pattern.permute.xlu0 0
    %756 = vperm.xlu0 %755, %v725
    %v757 = vpop.permute.xlu0 %756
    %760 = vset.pattern.permute.xlu0 0
    %761 = vperm.xlu0 %760, %v726
    %v762 = vpop.permute.xlu0 %761
    %765 = vset.pattern.permute.xlu0 0
    %766 = vperm.xlu0 %765, %v727
    %v767 = vpop.permute.xlu0 %766
    %770 = vset.pattern.permute.xlu0 0
    %771 = vperm.xlu0 %770, %v728
    %v772 = vpop.permute.xlu0 %771
    %775 = vset.pattern.permute.xlu0 0
    %776 = vperm.xlu0 %775, %v729
    %v777 = vpop.permute.xlu0 %776
    %780 = vset.pattern.permute.xlu0 0
    %781 = vperm.xlu0 %780, %v730
    %v782 = vpop.permute.xlu0 %781
    %785 = vset.pattern.permute.xlu0 0
    %786 = vperm.xlu0 %785, %v731
    %v787 = vpop.permute.xlu0 %786
    %790 = vset.pattern.permute.xlu0 0
    %791 = vperm.xlu0 %790, %v732
    %v792 = vpop.permute.xlu0 %791
    %795 = vset.pattern.permute.xlu0 0
    %796 = vperm.xlu0 %795, %v733
    %v797 = vpop.permute.xlu0 %796
    %800 = vset.pattern.permute.xlu0 0
    %801 = vperm.xlu0 %800, %v734
    %v802 = vpop.permute.xlu0 %801
    %805 = vset.pattern.permute.xlu0 0
    %806 = vperm.xlu0 %805, %v735
    %v807 = vpop.permute.xlu0 %806
    %810 = vset.pattern.permute.xlu0 0
    %811 = vperm.xlu0 %810, %v736
    %v812 = vpop.permute.xlu0 %811
    %815 = vset.pattern.permute.xlu0 0
    %816 = vperm.xlu0 %815, %v737
    %v817 = vpop.permute.xlu0 %816
    %v820 = vlaneseq
    %v821 = vshrl.u32 %v820, 7
    %v822 = vsub.s32 0, %v821
    %v823 = vrot.slane %v738, %v822
    %v825 = vadd.f32 %v742, %v823
    %v826 = vadd.f32 %v747, %v823
    %v827 = vadd.f32 %v752, %v823
    %v828 = vadd.f32 %v757, %v823
    %v829 = vadd.f32 %v762, %v823
    %v830 = vadd.f32 %v767, %v823
    %v831 = vadd.f32 %v772, %v823
    %v832 = vadd.f32 %v777, %v823
    %v833 = vadd.f32 %v782, %v823
    %v834 = vadd.f32 %v787, %v823
    %v835 = vadd.f32 %v792, %v823
    %v836 = vadd.f32 %v797, %v823
    %v837 = vadd.f32 %v802, %v823
    %v838 = vadd.f32 %v807, %v823
    %v839 = vadd.f32 %v812, %v823
    %v840 = vadd.f32 %v817, %v823
    %v841 = vld [vmem:[#allocation2] sm:$0xff]
    %v842 = vld [vmem:[#allocation2 + $0x8] sm:$0xff]
    %v843 = vld [vmem:[#allocation2 + $0x10] sm:$0xff]
    %v844 = vld [vmem:[#allocation2 + $0x18] sm:$0xff]
    %v845 = vld [vmem:[#allocation2 + $0x20] sm:$0xff]
    %v846 = vld [vmem:[#allocation2 + $0x28] sm:$0xff]
    %v847 = vld [vmem:[#allocation2 + $0x30] sm:$0xff]
    %v848 = vld [vmem:[#allocation2 + $0x38] sm:$0xff]
    %v849 = vld [vmem:[#allocation2 + $0x40] sm:$0xff]
    %v850 = vld [vmem:[#allocation2 + $0x48] sm:$0xff]
    %v851 = vld [vmem:[#allocation2 + $0x50] sm:$0xff]
    %v852 = vld [vmem:[#allocation2 + $0x58] sm:$0xff]
    %v853 = vld [vmem:[#allocation2 + $0x60] sm:$0xff]
    %v854 = vld [vmem:[#allocation2 + $0x68] sm:$0xff]
    %v855 = vld [vmem:[#allocation2 + $0x70] sm:$0xff]
    %v856 = vld [vmem:[#allocation2 + $0x78] sm:$0xff]
    %v857 = vmul.f32 %v841, 2.0
    %v858 = vmul.f32 %v842, 2.0
    %v859 = vmul.f32 %v843, 2.0
    %v860 = vmul.f32 %v844, 2.0
    %v861 = vmul.f32 %v845, 2.0
    %v862 = vmul.f32 %v846, 2.0
    %v863 = vmul.f32 %v847, 2.0
    %v864 = vmul.f32 %v848, 2.0
    %v865 = vmul.f32 %v849, 2.0
    %v866 = vmul.f32 %v850, 2.0
    %v867 = vmul.f32 %v851, 2.0
    %v868 = vmul.f32 %v852, 2.0
    %v869 = vmul.f32 %v853, 2.0
    %v870 = vmul.f32 %v854, 2.0
    %v871 = vmul.f32 %v855, 2.0
    %v872 = vmul.f32 %v856, 2.0
    %v873 = vsub.f32 %v825, %v857
    %v874 = vsub.f32 %v826, %v858
    %v875 = vsub.f32 %v827, %v859
    %v876 = vsub.f32 %v828, %v860
    %v877 = vsub.f32 %v829, %v861
    %v878 = vsub.f32 %v830, %v862
    %v879 = vsub.f32 %v831, %v863
    %v880 = vsub.f32 %v832, %v864
    %v881 = vsub.f32 %v833, %v865
    %v882 = vsub.f32 %v834, %v866
    %v883 = vsub.f32 %v835, %v867
    %v884 = vsub.f32 %v836, %v868
    %v885 = vsub.f32 %v837, %v869
    %v886 = vsub.f32 %v838, %v870
    %v887 = vsub.f32 %v839, %v871
    %v888 = vsub.f32 %v840, %v872
    %s889 = smul.u32 0, 128
    %v890 = vlaneseq
    %v891 = vshrl.u32 %v890, 7
    %v892 = vadd.s32 %v891, 8
    %v893 = vadd.s32 %v891, 16
    %v894 = vadd.s32 %v891, 24
    %v895 = vadd.s32 %v891, 32
    %v896 = vadd.s32 %v891, 40
    %v897 = vadd.s32 %v891, 48
    %v898 = vadd.s32 %v891, 56
    %v899 = vadd.s32 %v891, 64
    %v900 = vadd.s32 %v891, 72
    %v901 = vadd.s32 %v891, 80
    %v902 = vadd.s32 %v891, 88
    %v903 = vadd.s32 %v891, 96
    %v904 = vadd.s32 %v891, 104
    %v905 = vadd.s32 %v891, 112
    %v906 = vadd.s32 %v891, 120
    %v907 = vstv %s889
    %v908 = vadd.s32 %v907, %v891
    %v909 = vadd.s32 %v907, %v892
    %v910 = vadd.s32 %v907, %v893
    %v911 = vadd.s32 %v907, %v894
    %v912 = vadd.s32 %v907, %v895
    %v913 = vadd.s32 %v907, %v896
    %v914 = vadd.s32 %v907, %v897
    %v915 = vadd.s32 %v907, %v898
    %v916 = vadd.s32 %v907, %v899
    %v917 = vadd.s32 %v907, %v900
    %v918 = vadd.s32 %v907, %v901
    %v919 = vadd.s32 %v907, %v902
    %v920 = vadd.s32 %v907, %v903
    %v921 = vadd.s32 %v907, %v904
    %v922 = vadd.s32 %v907, %v905
    %v923 = vadd.s32 %v907, %v906
    %s924 = smul.u32 0, 128
    %v925 = vlaneseq
    %v926 = vand.u32 %v925, 127
    %v927 = vstv %s924
    %v928 = vadd.s32 %v927, %v926
    %v929 = vld [vmem:[%s2] sm:$0xff]
    %v930 = vld [vmem:[%s2 + $0x8] sm:$0xff]
    %v931 = vld [vmem:[%s2 + $0x10] sm:$0xff]
    %v932 = vld [vmem:[%s2 + $0x18] sm:$0xff]
    %v933 = vld [vmem:[%s2 + $0x20] sm:$0xff]
    %v934 = vld [vmem:[%s2 + $0x28] sm:$0xff]
    %v935 = vld [vmem:[%s2 + $0x30] sm:$0xff]
    %v936 = vld [vmem:[%s2 + $0x38] sm:$0xff]
    %v937 = vld [vmem:[%s2 + $0x40] sm:$0xff]
    %v938 = vld [vmem:[%s2 + $0x48] sm:$0xff]
    %v939 = vld [vmem:[%s2 + $0x50] sm:$0xff]
    %v940 = vld [vmem:[%s2 + $0x58] sm:$0xff]
    %v941 = vld [vmem:[%s2 + $0x60] sm:$0xff]
    %v942 = vld [vmem:[%s2 + $0x68] sm:$0xff]
    %v943 = vld [vmem:[%s2 + $0x70] sm:$0xff]
    %v944 = vld [vmem:[%s2 + $0x78] sm:$0xff]
    %v945 = vld [vmem:[%s3] sm:$0x1]
    %946 = vset.pattern.permute.xlu0 0
    %947 = vperm.xlu0 %946, %v929
    %v948 = vpop.permute.xlu0 %947
    %949 = vset.pattern.permute.xlu0 0
    %950 = vperm.xlu0 %949, %v930
    %v951 = vpop.permute.xlu0 %950
    %952 = vset.pattern.permute.xlu0 0
    %953 = vperm.xlu0 %952, %v931
    %v954 = vpop.permute.xlu0 %953
    %955 = vset.pattern.permute.xlu0 0
    %956 = vperm.xlu0 %955, %v932
    %v957 = vpop.permute.xlu0 %956
    %958 = vset.pattern.permute.xlu0 0
    %959 = vperm.xlu0 %958, %v933
    %v960 = vpop.permute.xlu0 %959
    %961 = vset.pattern.permute.xlu0 0
    %962 = vperm.xlu0 %961, %v934
    %v963 = vpop.permute.xlu0 %962
    %964 = vset.pattern.permute.xlu0 0
    %965 = vperm.xlu0 %964, %v935
    %v966 = vpop.permute.xlu0 %965
    %967 = vset.pattern.permute.xlu0 0
    %968 = vperm.xlu0 %967, %v936
    %v969 = vpop.permute.xlu0 %968
    %970 = vset.pattern.permute.xlu0 0
    %971 = vperm.xlu0 %970, %v937
    %v972 = vpop.permute.xlu0 %971
    %973 = vset.pattern.permute.xlu0 0
    %974 = vperm.xlu0 %973, %v938
    %v975 = vpop.permute.xlu0 %974
    %976 = vset.pattern.permute.xlu0 0
    %977 = vperm.xlu0 %976, %v939
    %v978 = vpop.permute.xlu0 %977
    %979 = vset.pattern.permute.xlu0 0
    %980 = vperm.xlu0 %979, %v940
    %v981 = vpop.permute.xlu0 %980
    %982 = vset.pattern.permute.xlu0 0
    %983 = vperm.xlu0 %982, %v941
    %v984 = vpop.permute.xlu0 %983
    %985 = vset.pattern.permute.xlu0 0
    %986 = vperm.xlu0 %985, %v942
    %v987 = vpop.permute.xlu0 %986
    %988 = vset.pattern.permute.xlu0 0
    %989 = vperm.xlu0 %988, %v943
    %v990 = vpop.permute.xlu0 %989
    %991 = vset.pattern.permute.xlu0 0
    %992 = vperm.xlu0 %991, %v944
    %v993 = vpop.permute.xlu0 %992
    %v994 = vlaneseq
    %v995 = vshrl.u32 %v994, 7
    %v996 = vsub.s32 0, %v995
    %v997 = vrot.slane %v945, %v996
    %vm998 = vcmp.eq.s32.totalorder %v948, %v997
    %vm999 = vcmp.eq.s32.totalorder %v951, %v997
    %vm1000 = vcmp.eq.s32.totalorder %v954, %v997
    %vm1001 = vcmp.eq.s32.totalorder %v957, %v997
    %vm1002 = vcmp.eq.s32.totalorder %v960, %v997
    %vm1003 = vcmp.eq.s32.totalorder %v963, %v997
    %vm1004 = vcmp.eq.s32.totalorder %v966, %v997
    %vm1005 = vcmp.eq.s32.totalorder %v969, %v997
    %vm1006 = vcmp.eq.s32.totalorder %v972, %v997
    %vm1007 = vcmp.eq.s32.totalorder %v975, %v997
    %vm1008 = vcmp.eq.s32.totalorder %v978, %v997
    %vm1009 = vcmp.eq.s32.totalorder %v981, %v997
    %vm1010 = vcmp.eq.s32.totalorder %v984, %v997
    %vm1011 = vcmp.eq.s32.totalorder %v987, %v997
    %vm1012 = vcmp.eq.s32.totalorder %v990, %v997
    %vm1013 = vcmp.eq.s32.totalorder %v993, %v997
    %vm1014 = vcmp.lt.s32.totalorder %v928, 8
    %vm1015 = vmand %vm1014, %vm998
    %vm1016 = vmand %vm1014, %vm999
    %vm1017 = vmand %vm1014, %vm1000
    %vm1018 = vmand %vm1014, %vm1001
    %vm1019 = vmand %vm1014, %vm1002
    %vm1020 = vmand %vm1014, %vm1003
    %vm1021 = vmand %vm1014, %vm1004
    %vm1022 = vmand %vm1014, %vm1005
    %vm1023 = vmand %vm1014, %vm1006
    %vm1024 = vmand %vm1014, %vm1007
    %vm1025 = vmand %vm1014, %vm1008
    %vm1026 = vmand %vm1014, %vm1009
    %vm1027 = vmand %vm1014, %vm1010
    %vm1028 = vmand %vm1014, %vm1011
    %vm1029 = vmand %vm1014, %vm1012
    %vm1030 = vmand %vm1014, %vm1013
    %vm1031 = vcmp.ne.s32.totalorder %v908, %v928
    %vm1032 = vcmp.ne.s32.totalorder %v909, %v928
    %vm1033 = vcmp.ne.s32.totalorder %v910, %v928
    %vm1034 = vcmp.ne.s32.totalorder %v911, %v928
    %vm1035 = vcmp.ne.s32.totalorder %v912, %v928
    %vm1036 = vcmp.ne.s32.totalorder %v913, %v928
    %vm1037 = vcmp.ne.s32.totalorder %v914, %v928
    %vm1038 = vcmp.ne.s32.totalorder %v915, %v928
    %vm1039 = vcmp.ne.s32.totalorder %v916, %v928
    %vm1040 = vcmp.ne.s32.totalorder %v917, %v928
    %vm1041 = vcmp.ne.s32.totalorder %v918, %v928
    %vm1042 = vcmp.ne.s32.totalorder %v919, %v928
    %vm1043 = vcmp.ne.s32.totalorder %v920, %v928
    %vm1044 = vcmp.ne.s32.totalorder %v921, %v928
    %vm1045 = vcmp.ne.s32.totalorder %v922, %v928
    %vm1046 = vcmp.ne.s32.totalorder %v923, %v928
    %vm1047 = vmand %vm1015, %vm1031
    %vm1048 = vmand %vm1016, %vm1032
    %vm1049 = vmand %vm1017, %vm1033
    %vm1050 = vmand %vm1018, %vm1034
    %vm1051 = vmand %vm1019, %vm1035
    %vm1052 = vmand %vm1020, %vm1036
    %vm1053 = vmand %vm1021, %vm1037
    %vm1054 = vmand %vm1022, %vm1038
    %vm1055 = vmand %vm1023, %vm1039
    %vm1056 = vmand %vm1024, %vm1040
    %vm1057 = vmand %vm1025, %vm1041
    %vm1058 = vmand %vm1026, %vm1042
    %vm1059 = vmand %vm1027, %vm1043
    %vm1060 = vmand %vm1028, %vm1044
    %vm1061 = vmand %vm1029, %vm1045
    %vm1062 = vmand %vm1030, %vm1046
    %vm1063 = vmxor %vm998, 1
    %vm1064 = vmxor %vm999, 1
    %vm1065 = vmxor %vm1000, 1
    %vm1066 = vmxor %vm1001, 1
    %vm1067 = vmxor %vm1002, 1
    %vm1068 = vmxor %vm1003, 1
    %vm1069 = vmxor %vm1004, 1
    %vm1070 = vmxor %vm1005, 1
    %vm1071 = vmxor %vm1006, 1
    %vm1072 = vmxor %vm1007, 1
    %vm1073 = vmxor %vm1008, 1
    %vm1074 = vmxor %vm1009, 1
    %vm1075 = vmxor %vm1010, 1
    %vm1076 = vmxor %vm1011, 1
    %vm1077 = vmxor %vm1012, 1
    %vm1078 = vmxor %vm1013, 1
    %vm1079 = vmand %vm1014, %vm1063
    %vm1080 = vmand %vm1014, %vm1064
    %vm1081 = vmand %vm1014, %vm1065
    %vm1082 = vmand %vm1014, %vm1066
    %vm1083 = vmand %vm1014, %vm1067
    %vm1084 = vmand %vm1014, %vm1068
    %vm1085 = vmand %vm1014, %vm1069
    %vm1086 = vmand %vm1014, %vm1070
    %vm1087 = vmand %vm1014, %vm1071
    %vm1088 = vmand %vm1014, %vm1072
    %vm1089 = vmand %vm1014, %vm1073
    %vm1090 = vmand %vm1014, %vm1074
    %vm1091 = vmand %vm1014, %vm1075
    %vm1092 = vmand %vm1014, %vm1076
    %vm1093 = vmand %vm1014, %vm1077
    %vm1094 = vmand %vm1014, %vm1078
    %v1095 = vsel %vm1047, %v873, -inf
    %v1096 = vsel %vm1048, %v874, -inf
    %v1097 = vsel %vm1049, %v875, -inf
    %v1098 = vsel %vm1050, %v876, -inf
    %v1099 = vsel %vm1051, %v877, -inf
    %v1100 = vsel %vm1052, %v878, -inf
    %v1101 = vsel %vm1053, %v879, -inf
    %v1102 = vsel %vm1054, %v880, -inf
    %v1103 = vsel %vm1055, %v881, -inf
    %v1104 = vsel %vm1056, %v882, -inf
    %v1105 = vsel %vm1057, %v883, -inf
    %v1106 = vsel %vm1058, %v884, -inf
    %v1107 = vsel %vm1059, %v885, -inf
    %v1108 = vsel %vm1060, %v886, -inf
    %v1109 = vsel %vm1061, %v887, -inf
    %v1110 = vsel %vm1062, %v888, -inf
    %v1111 = vsel %vm1079, %v873, inf
    %v1112 = vsel %vm1080, %v874, inf
    %v1113 = vsel %vm1081, %v875, inf
    %v1114 = vsel %vm1082, %v876, inf
    %v1115 = vsel %vm1083, %v877, inf
    %v1116 = vsel %vm1084, %v878, inf
    %v1117 = vsel %vm1085, %v879, inf
    %v1118 = vsel %vm1086, %v880, inf
    %v1119 = vsel %vm1087, %v881, inf
    %v1120 = vsel %vm1088, %v882, inf
    %v1121 = vsel %vm1089, %v883, inf
    %v1122 = vsel %vm1090, %v884, inf
    %v1123 = vsel %vm1091, %v885, inf
    %v1124 = vsel %vm1092, %v886, inf
    %v1125 = vsel %vm1093, %v887, inf
    %v1126 = vsel %vm1094, %v888, inf
    %1127 = vmax.xlane.f32.xlu0 %v1095
    %v1128 = vpop.xlane.xlu0 %1127
    %1129 = vmax.xlane.f32.xlu0 %v1096
    %v1130 = vpop.xlane.xlu0 %1129
    %1131 = vmax.xlane.f32.xlu0 %v1097
    %v1132 = vpop.xlane.xlu0 %1131
    %1133 = vmax.xlane.f32.xlu0 %v1098
    %v1134 = vpop.xlane.xlu0 %1133
    %1135 = vmax.xlane.f32.xlu0 %v1099
    %v1136 = vpop.xlane.xlu0 %1135
    %1137 = vmax.xlane.f32.xlu0 %v1100
    %v1138 = vpop.xlane.xlu0 %1137
    %1139 = vmax.xlane.f32.xlu0 %v1101
    %v1140 = vpop.xlane.xlu0 %1139
    %1141 = vmax.xlane.f32.xlu0 %v1102
    %v1142 = vpop.xlane.xlu0 %1141
    %1143 = vmax.xlane.f32.xlu0 %v1103
    %v1144 = vpop.xlane.xlu0 %1143
    %1145 = vmax.xlane.f32.xlu0 %v1104
    %v1146 = vpop.xlane.xlu0 %1145
    %1147 = vmax.xlane.f32.xlu0 %v1105
    %v1148 = vpop.xlane.xlu0 %1147
    %1149 = vmax.xlane.f32.xlu0 %v1106
    %v1150 = vpop.xlane.xlu0 %1149
    %1151 = vmax.xlane.f32.xlu0 %v1107
    %v1152 = vpop.xlane.xlu0 %1151
    %1153 = vmax.xlane.f32.xlu0 %v1108
    %v1154 = vpop.xlane.xlu0 %1153
    %1155 = vmax.xlane.f32.xlu0 %v1109
    %v1156 = vpop.xlane.xlu0 %1155
    %1157 = vmax.xlane.f32.xlu0 %v1110
    %v1158 = vpop.xlane.xlu0 %1157
    %1159 = vmin.xlane.f32.xlu0 %v1111
    %v1160 = vpop.xlane.xlu0 %1159
    %1161 = vmin.xlane.f32.xlu0 %v1112
    %v1162 = vpop.xlane.xlu0 %1161
    %1163 = vmin.xlane.f32.xlu0 %v1113
    %v1164 = vpop.xlane.xlu0 %1163
    %1165 = vmin.xlane.f32.xlu0 %v1114
    %v1166 = vpop.xlane.xlu0 %1165
    %1167 = vmin.xlane.f32.xlu0 %v1115
    %v1168 = vpop.xlane.xlu0 %1167
    %1169 = vmin.xlane.f32.xlu0 %v1116
    %v1170 = vpop.xlane.xlu0 %1169
    %1171 = vmin.xlane.f32.xlu0 %v1117
    %v1172 = vpop.xlane.xlu0 %1171
    %1173 = vmin.xlane.f32.xlu0 %v1118
    %v1174 = vpop.xlane.xlu0 %1173
    %1175 = vmin.xlane.f32.xlu0 %v1119
    %v1176 = vpop.xlane.xlu0 %1175
    %1177 = vmin.xlane.f32.xlu0 %v1120
    %v1178 = vpop.xlane.xlu0 %1177
    %1179 = vmin.xlane.f32.xlu0 %v1121
    %v1180 = vpop.xlane.xlu0 %1179
    %1181 = vmin.xlane.f32.xlu0 %v1122
    %v1182 = vpop.xlane.xlu0 %1181
    %1183 = vmin.xlane.f32.xlu0 %v1123
    %v1184 = vpop.xlane.xlu0 %1183
    %1185 = vmin.xlane.f32.xlu0 %v1124
    %v1186 = vpop.xlane.xlu0 %1185
    %1187 = vmin.xlane.f32.xlu0 %v1125
    %v1188 = vpop.xlane.xlu0 %1187
    %1189 = vmin.xlane.f32.xlu0 %v1126
    %v1190 = vpop.xlane.xlu0 %1189
    %v1191 = vcvt.s32.f32 %v928
    %vm1192 = vcmp.eq.f32.partialorder %v1095, %v1128
    %vm1193 = vcmp.eq.f32.partialorder %v1096, %v1130
    %vm1194 = vcmp.eq.f32.partialorder %v1097, %v1132
    %vm1195 = vcmp.eq.f32.partialorder %v1098, %v1134
    %vm1196 = vcmp.eq.f32.partialorder %v1099, %v1136
    %vm1197 = vcmp.eq.f32.partialorder %v1100, %v1138
    %vm1198 = vcmp.eq.f32.partialorder %v1101, %v1140
    %vm1199 = vcmp.eq.f32.partialorder %v1102, %v1142
    %vm1200 = vcmp.eq.f32.partialorder %v1103, %v1144
    %vm1201 = vcmp.eq.f32.partialorder %v1104, %v1146
    %vm1202 = vcmp.eq.f32.partialorder %v1105, %v1148
    %vm1203 = vcmp.eq.f32.partialorder %v1106, %v1150
    %vm1204 = vcmp.eq.f32.partialorder %v1107, %v1152
    %vm1205 = vcmp.eq.f32.partialorder %v1108, %v1154
    %vm1206 = vcmp.eq.f32.partialorder %v1109, %v1156
    %vm1207 = vcmp.eq.f32.partialorder %v1110, %v1158
    %v1208 = vsel %vm1192, %v1191, 1e+09
    %v1209 = vsel %vm1193, %v1191, 1e+09
    %v1210 = vsel %vm1194, %v1191, 1e+09
    %v1211 = vsel %vm1195, %v1191, 1e+09
    %v1212 = vsel %vm1196, %v1191, 1e+09
    %v1213 = vsel %vm1197, %v1191, 1e+09
    %v1214 = vsel %vm1198, %v1191, 1e+09
    %v1215 = vsel %vm1199, %v1191, 1e+09
    %v1216 = vsel %vm1200, %v1191, 1e+09
    %v1217 = vsel %vm1201, %v1191, 1e+09
    %v1218 = vsel %vm1202, %v1191, 1e+09
    %v1219 = vsel %vm1203, %v1191, 1e+09
    %v1220 = vsel %vm1204, %v1191, 1e+09
    %v1221 = vsel %vm1205, %v1191, 1e+09
    %v1222 = vsel %vm1206, %v1191, 1e+09
    %v1223 = vsel %vm1207, %v1191, 1e+09
    %1224 = vmin.xlane.f32.xlu0 %v1208
    %v1225 = vpop.xlane.xlu0 %1224
    %1226 = vmin.xlane.f32.xlu0 %v1209
    %v1227 = vpop.xlane.xlu0 %1226
    %1228 = vmin.xlane.f32.xlu0 %v1210
    %v1229 = vpop.xlane.xlu0 %1228
    %1230 = vmin.xlane.f32.xlu0 %v1211
    %v1231 = vpop.xlane.xlu0 %1230
    %1232 = vmin.xlane.f32.xlu0 %v1212
    %v1233 = vpop.xlane.xlu0 %1232
    %1234 = vmin.xlane.f32.xlu0 %v1213
    %v1235 = vpop.xlane.xlu0 %1234
    %1236 = vmin.xlane.f32.xlu0 %v1214
    %v1237 = vpop.xlane.xlu0 %1236
    %1238 = vmin.xlane.f32.xlu0 %v1215
    %v1239 = vpop.xlane.xlu0 %1238
    %1240 = vmin.xlane.f32.xlu0 %v1216
    %v1241 = vpop.xlane.xlu0 %1240
    %1242 = vmin.xlane.f32.xlu0 %v1217
    %v1243 = vpop.xlane.xlu0 %1242
    %1244 = vmin.xlane.f32.xlu0 %v1218
    %v1245 = vpop.xlane.xlu0 %1244
    %1246 = vmin.xlane.f32.xlu0 %v1219
    %v1247 = vpop.xlane.xlu0 %1246
    %1248 = vmin.xlane.f32.xlu0 %v1220
    %v1249 = vpop.xlane.xlu0 %1248
    %1250 = vmin.xlane.f32.xlu0 %v1221
    %v1251 = vpop.xlane.xlu0 %1250
    %1252 = vmin.xlane.f32.xlu0 %v1222
    %v1253 = vpop.xlane.xlu0 %1252
    %1254 = vmin.xlane.f32.xlu0 %v1223
    %v1255 = vpop.xlane.xlu0 %1254
    %v1256 = vcvt.f32.s32.to.zero.pseudo %v1225
    %v1257 = vcvt.f32.s32.to.zero.pseudo %v1227
    %v1258 = vcvt.f32.s32.to.zero.pseudo %v1229
    %v1259 = vcvt.f32.s32.to.zero.pseudo %v1231
    %v1260 = vcvt.f32.s32.to.zero.pseudo %v1233
    %v1261 = vcvt.f32.s32.to.zero.pseudo %v1235
    %v1262 = vcvt.f32.s32.to.zero.pseudo %v1237
    %v1263 = vcvt.f32.s32.to.zero.pseudo %v1239
    %v1264 = vcvt.f32.s32.to.zero.pseudo %v1241
    %v1265 = vcvt.f32.s32.to.zero.pseudo %v1243
    %v1266 = vcvt.f32.s32.to.zero.pseudo %v1245
    %v1267 = vcvt.f32.s32.to.zero.pseudo %v1247
    %v1268 = vcvt.f32.s32.to.zero.pseudo %v1249
    %v1269 = vcvt.f32.s32.to.zero.pseudo %v1251
    %v1270 = vcvt.f32.s32.to.zero.pseudo %v1253
    %v1271 = vcvt.f32.s32.to.zero.pseudo %v1255
    %vm1272 = vcmp.eq.f32.partialorder %v1111, %v1160
    %vm1273 = vcmp.eq.f32.partialorder %v1112, %v1162
    %vm1274 = vcmp.eq.f32.partialorder %v1113, %v1164
    %vm1275 = vcmp.eq.f32.partialorder %v1114, %v1166
    %vm1276 = vcmp.eq.f32.partialorder %v1115, %v1168
    %vm1277 = vcmp.eq.f32.partialorder %v1116, %v1170
    %vm1278 = vcmp.eq.f32.partialorder %v1117, %v1172
    %vm1279 = vcmp.eq.f32.partialorder %v1118, %v1174
    %vm1280 = vcmp.eq.f32.partialorder %v1119, %v1176
    %vm1281 = vcmp.eq.f32.partialorder %v1120, %v1178
    %vm1282 = vcmp.eq.f32.partialorder %v1121, %v1180
    %vm1283 = vcmp.eq.f32.partialorder %v1122, %v1182
    %vm1284 = vcmp.eq.f32.partialorder %v1123, %v1184
    %vm1285 = vcmp.eq.f32.partialorder %v1124, %v1186
    %vm1286 = vcmp.eq.f32.partialorder %v1125, %v1188
    %vm1287 = vcmp.eq.f32.partialorder %v1126, %v1190
    %v1288 = vsel %vm1272, %v1191, 1e+09
    %v1289 = vsel %vm1273, %v1191, 1e+09
    %v1290 = vsel %vm1274, %v1191, 1e+09
    %v1291 = vsel %vm1275, %v1191, 1e+09
    %v1292 = vsel %vm1276, %v1191, 1e+09
    %v1293 = vsel %vm1277, %v1191, 1e+09
    %v1294 = vsel %vm1278, %v1191, 1e+09
    %v1295 = vsel %vm1279, %v1191, 1e+09
    %v1296 = vsel %vm1280, %v1191, 1e+09
    %v1297 = vsel %vm1281, %v1191, 1e+09
    %v1298 = vsel %vm1282, %v1191, 1e+09
    %v1299 = vsel %vm1283, %v1191, 1e+09
    %v1300 = vsel %vm1284, %v1191, 1e+09
    %v1301 = vsel %vm1285, %v1191, 1e+09
    %v1302 = vsel %vm1286, %v1191, 1e+09
    %v1303 = vsel %vm1287, %v1191, 1e+09
    %1304 = vmin.xlane.f32.xlu0 %v1288
    %v1305 = vpop.xlane.xlu0 %1304
    %1306 = vmin.xlane.f32.xlu0 %v1289
    %v1307 = vpop.xlane.xlu0 %1306
    %1308 = vmin.xlane.f32.xlu0 %v1290
    %v1309 = vpop.xlane.xlu0 %1308
    %1310 = vmin.xlane.f32.xlu0 %v1291
    %v1311 = vpop.xlane.xlu0 %1310
    %1312 = vmin.xlane.f32.xlu0 %v1292
    %v1313 = vpop.xlane.xlu0 %1312
    %1314 = vmin.xlane.f32.xlu0 %v1293
    %v1315 = vpop.xlane.xlu0 %1314
    %1316 = vmin.xlane.f32.xlu0 %v1294
    %v1317 = vpop.xlane.xlu0 %1316
    %1318 = vmin.xlane.f32.xlu0 %v1295
    %v1319 = vpop.xlane.xlu0 %1318
    %1320 = vmin.xlane.f32.xlu0 %v1296
    %v1321 = vpop.xlane.xlu0 %1320
    %1322 = vmin.xlane.f32.xlu0 %v1297
    %v1323 = vpop.xlane.xlu0 %1322
    %1324 = vmin.xlane.f32.xlu0 %v1298
    %v1325 = vpop.xlane.xlu0 %1324
    %1326 = vmin.xlane.f32.xlu0 %v1299
    %v1327 = vpop.xlane.xlu0 %1326
    %1328 = vmin.xlane.f32.xlu0 %v1300
    %v1329 = vpop.xlane.xlu0 %1328
    %1330 = vmin.xlane.f32.xlu0 %v1301
    %v1331 = vpop.xlane.xlu0 %1330
    %1332 = vmin.xlane.f32.xlu0 %v1302
    %v1333 = vpop.xlane.xlu0 %1332
    %1334 = vmin.xlane.f32.xlu0 %v1303
    %v1335 = vpop.xlane.xlu0 %1334
    %v1336 = vcvt.f32.s32.to.zero.pseudo %v1305
    %v1337 = vcvt.f32.s32.to.zero.pseudo %v1307
    %v1338 = vcvt.f32.s32.to.zero.pseudo %v1309
    %v1339 = vcvt.f32.s32.to.zero.pseudo %v1311
    %v1340 = vcvt.f32.s32.to.zero.pseudo %v1313
    %v1341 = vcvt.f32.s32.to.zero.pseudo %v1315
    %v1342 = vcvt.f32.s32.to.zero.pseudo %v1317
    %v1343 = vcvt.f32.s32.to.zero.pseudo %v1319
    %v1344 = vcvt.f32.s32.to.zero.pseudo %v1321
    %v1345 = vcvt.f32.s32.to.zero.pseudo %v1323
    %v1346 = vcvt.f32.s32.to.zero.pseudo %v1325
    %v1347 = vcvt.f32.s32.to.zero.pseudo %v1327
    %v1348 = vcvt.f32.s32.to.zero.pseudo %v1329
    %v1349 = vcvt.f32.s32.to.zero.pseudo %v1331
    %v1350 = vcvt.f32.s32.to.zero.pseudo %v1333
    %v1351 = vcvt.f32.s32.to.zero.pseudo %v1335
    %v1352 = vld [vmem:[#allocation5] sm:$0xff]
    %v1353 = vld [vmem:[#allocation5 + $0x8] sm:$0xff]
    %v1354 = vld [vmem:[#allocation5 + $0x10] sm:$0xff]
    %v1355 = vld [vmem:[#allocation5 + $0x18] sm:$0xff]
    %v1356 = vld [vmem:[#allocation5 + $0x20] sm:$0xff]
    %v1357 = vld [vmem:[#allocation5 + $0x28] sm:$0xff]
    %v1358 = vld [vmem:[#allocation5 + $0x30] sm:$0xff]
    %v1359 = vld [vmem:[#allocation5 + $0x38] sm:$0xff]
    %v1360 = vld [vmem:[#allocation5 + $0x40] sm:$0xff]
    %v1361 = vld [vmem:[#allocation5 + $0x48] sm:$0xff]
    %v1362 = vld [vmem:[#allocation5 + $0x50] sm:$0xff]
    %v1363 = vld [vmem:[#allocation5 + $0x58] sm:$0xff]
    %v1364 = vld [vmem:[#allocation5 + $0x60] sm:$0xff]
    %v1365 = vld [vmem:[#allocation5 + $0x68] sm:$0xff]
    %v1366 = vld [vmem:[#allocation5 + $0x70] sm:$0xff]
    %v1367 = vld [vmem:[#allocation5 + $0x78] sm:$0xff]
    %vm1368 = vcmp.gt.f32.partialorder %v1128, %v1352
    %vm1369 = vcmp.gt.f32.partialorder %v1130, %v1353
    %vm1370 = vcmp.gt.f32.partialorder %v1132, %v1354
    %vm1371 = vcmp.gt.f32.partialorder %v1134, %v1355
    %vm1372 = vcmp.gt.f32.partialorder %v1136, %v1356
    %vm1373 = vcmp.gt.f32.partialorder %v1138, %v1357
    %vm1374 = vcmp.gt.f32.partialorder %v1140, %v1358
    %vm1375 = vcmp.gt.f32.partialorder %v1142, %v1359
    %vm1376 = vcmp.gt.f32.partialorder %v1144, %v1360
    %vm1377 = vcmp.gt.f32.partialorder %v1146, %v1361
    %vm1378 = vcmp.gt.f32.partialorder %v1148, %v1362
    %vm1379 = vcmp.gt.f32.partialorder %v1150, %v1363
    %vm1380 = vcmp.gt.f32.partialorder %v1152, %v1364
    %vm1381 = vcmp.gt.f32.partialorder %v1154, %v1365
    %vm1382 = vcmp.gt.f32.partialorder %v1156, %v1366
    %vm1383 = vcmp.gt.f32.partialorder %v1158, %v1367
    %v1384 = vsel %vm1368, %v1128, %v1352
    %v1385 = vsel %vm1369, %v1130, %v1353
    %v1386 = vsel %vm1370, %v1132, %v1354
    %v1387 = vsel %vm1371, %v1134, %v1355
    %v1388 = vsel %vm1372, %v1136, %v1356
    %v1389 = vsel %vm1373, %v1138, %v1357
    %v1390 = vsel %vm1374, %v1140, %v1358
    %v1391 = vsel %vm1375, %v1142, %v1359
    %v1392 = vsel %vm1376, %v1144, %v1360
    %v1393 = vsel %vm1377, %v1146, %v1361
    %v1394 = vsel %vm1378, %v1148, %v1362
    %v1395 = vsel %vm1379, %v1150, %v1363
    %v1396 = vsel %vm1380, %v1152, %v1364
    %v1397 = vsel %vm1381, %v1154, %v1365
    %v1398 = vsel %vm1382, %v1156, %v1366
    %v1399 = vsel %vm1383, %v1158, %v1367
    %1400 = vst.msk [vmem:[#allocation5] sm:$0xff] %vm562, %v1384
    %1401 = vst.msk [vmem:[#allocation5 + $0x8] sm:$0xff] %vm562, %v1385
    %1402 = vst.msk [vmem:[#allocation5 + $0x10] sm:$0xff] %vm562, %v1386
    %1403 = vst.msk [vmem:[#allocation5 + $0x18] sm:$0xff] %vm562, %v1387
    %1404 = vst.msk [vmem:[#allocation5 + $0x20] sm:$0xff] %vm562, %v1388
    %1405 = vst.msk [vmem:[#allocation5 + $0x28] sm:$0xff] %vm562, %v1389
    %1406 = vst.msk [vmem:[#allocation5 + $0x30] sm:$0xff] %vm562, %v1390
    %1407 = vst.msk [vmem:[#allocation5 + $0x38] sm:$0xff] %vm562, %v1391
    %1408 = vst.msk [vmem:[#allocation5 + $0x40] sm:$0xff] %vm562, %v1392
    %1409 = vst.msk [vmem:[#allocation5 + $0x48] sm:$0xff] %vm562, %v1393
    %1410 = vst.msk [vmem:[#allocation5 + $0x50] sm:$0xff] %vm562, %v1394
    %1411 = vst.msk [vmem:[#allocation5 + $0x58] sm:$0xff] %vm562, %v1395
    %1412 = vst.msk [vmem:[#allocation5 + $0x60] sm:$0xff] %vm562, %v1396
    %1413 = vst.msk [vmem:[#allocation5 + $0x68] sm:$0xff] %vm562, %v1397
    %1414 = vst.msk [vmem:[#allocation5 + $0x70] sm:$0xff] %vm562, %v1398
    %1415 = vst.msk [vmem:[#allocation5 + $0x78] sm:$0xff] %vm562, %v1399
    %v1416 = vld [vmem:[#allocation6] sm:$0xff]
    %v1417 = vld [vmem:[#allocation6 + $0x8] sm:$0xff]
    %v1418 = vld [vmem:[#allocation6 + $0x10] sm:$0xff]
    %v1419 = vld [vmem:[#allocation6 + $0x18] sm:$0xff]
    %v1420 = vld [vmem:[#allocation6 + $0x20] sm:$0xff]
    %v1421 = vld [vmem:[#allocation6 + $0x28] sm:$0xff]
    %v1422 = vld [vmem:[#allocation6 + $0x30] sm:$0xff]
    %v1423 = vld [vmem:[#allocation6 + $0x38] sm:$0xff]
    %v1424 = vld [vmem:[#allocation6 + $0x40] sm:$0xff]
    %v1425 = vld [vmem:[#allocation6 + $0x48] sm:$0xff]
    %v1426 = vld [vmem:[#allocation6 + $0x50] sm:$0xff]
    %v1427 = vld [vmem:[#allocation6 + $0x58] sm:$0xff]
    %v1428 = vld [vmem:[#allocation6 + $0x60] sm:$0xff]
    %v1429 = vld [vmem:[#allocation6 + $0x68] sm:$0xff]
    %v1430 = vld [vmem:[#allocation6 + $0x70] sm:$0xff]
    %v1431 = vld [vmem:[#allocation6 + $0x78] sm:$0xff]
    %v1432 = vsel %vm1368, %v1256, %v1416
    %v1433 = vsel %vm1369, %v1257, %v1417
    %v1434 = vsel %vm1370, %v1258, %v1418
    %v1435 = vsel %vm1371, %v1259, %v1419
    %v1436 = vsel %vm1372, %v1260, %v1420
    %v1437 = vsel %vm1373, %v1261, %v1421
    %v1438 = vsel %vm1374, %v1262, %v1422
    %v1439 = vsel %vm1375, %v1263, %v1423
    %v1440 = vsel %vm1376, %v1264, %v1424
    %v1441 = vsel %vm1377, %v1265, %v1425
    %v1442 = vsel %vm1378, %v1266, %v1426
    %v1443 = vsel %vm1379, %v1267, %v1427
    %v1444 = vsel %vm1380, %v1268, %v1428
    %v1445 = vsel %vm1381, %v1269, %v1429
    %v1446 = vsel %vm1382, %v1270, %v1430
    %v1447 = vsel %vm1383, %v1271, %v1431
    %1448 = vst.msk [vmem:[#allocation6] sm:$0xff] %vm562, %v1432
    %1449 = vst.msk [vmem:[#allocation6 + $0x8] sm:$0xff] %vm562, %v1433
    %1450 = vst.msk [vmem:[#allocation6 + $0x10] sm:$0xff] %vm562, %v1434
    %1451 = vst.msk [vmem:[#allocation6 + $0x18] sm:$0xff] %vm562, %v1435
    %1452 = vst.msk [vmem:[#allocation6 + $0x20] sm:$0xff] %vm562, %v1436
    %1453 = vst.msk [vmem:[#allocation6 + $0x28] sm:$0xff] %vm562, %v1437
    %1454 = vst.msk [vmem:[#allocation6 + $0x30] sm:$0xff] %vm562, %v1438
    %1455 = vst.msk [vmem:[#allocation6 + $0x38] sm:$0xff] %vm562, %v1439
    %1456 = vst.msk [vmem:[#allocation6 + $0x40] sm:$0xff] %vm562, %v1440
    %1457 = vst.msk [vmem:[#allocation6 + $0x48] sm:$0xff] %vm562, %v1441
    %1458 = vst.msk [vmem:[#allocation6 + $0x50] sm:$0xff] %vm562, %v1442
    %1459 = vst.msk [vmem:[#allocation6 + $0x58] sm:$0xff] %vm562, %v1443
    %1460 = vst.msk [vmem:[#allocation6 + $0x60] sm:$0xff] %vm562, %v1444
    %1461 = vst.msk [vmem:[#allocation6 + $0x68] sm:$0xff] %vm562, %v1445
    %1462 = vst.msk [vmem:[#allocation6 + $0x70] sm:$0xff] %vm562, %v1446
    %1463 = vst.msk [vmem:[#allocation6 + $0x78] sm:$0xff] %vm562, %v1447
    %v1464 = vld [vmem:[#allocation7] sm:$0xff]
    %v1465 = vld [vmem:[#allocation7 + $0x8] sm:$0xff]
    %v1466 = vld [vmem:[#allocation7 + $0x10] sm:$0xff]
    %v1467 = vld [vmem:[#allocation7 + $0x18] sm:$0xff]
    %v1468 = vld [vmem:[#allocation7 + $0x20] sm:$0xff]
    %v1469 = vld [vmem:[#allocation7 + $0x28] sm:$0xff]
    %v1470 = vld [vmem:[#allocation7 + $0x30] sm:$0xff]
    %v1471 = vld [vmem:[#allocation7 + $0x38] sm:$0xff]
    %v1472 = vld [vmem:[#allocation7 + $0x40] sm:$0xff]
    %v1473 = vld [vmem:[#allocation7 + $0x48] sm:$0xff]
    %v1474 = vld [vmem:[#allocation7 + $0x50] sm:$0xff]
    %v1475 = vld [vmem:[#allocation7 + $0x58] sm:$0xff]
    %v1476 = vld [vmem:[#allocation7 + $0x60] sm:$0xff]
    %v1477 = vld [vmem:[#allocation7 + $0x68] sm:$0xff]
    %v1478 = vld [vmem:[#allocation7 + $0x70] sm:$0xff]
    %v1479 = vld [vmem:[#allocation7 + $0x78] sm:$0xff]
    %vm1480 = vcmp.lt.f32.partialorder %v1160, %v1464
    %vm1481 = vcmp.lt.f32.partialorder %v1162, %v1465
    %vm1482 = vcmp.lt.f32.partialorder %v1164, %v1466
    %vm1483 = vcmp.lt.f32.partialorder %v1166, %v1467
    %vm1484 = vcmp.lt.f32.partialorder %v1168, %v1468
    %vm1485 = vcmp.lt.f32.partialorder %v1170, %v1469
    %vm1486 = vcmp.lt.f32.partialorder %v1172, %v1470
    %vm1487 = vcmp.lt.f32.partialorder %v1174, %v1471
    %vm1488 = vcmp.lt.f32.partialorder %v1176, %v1472
    %vm1489 = vcmp.lt.f32.partialorder %v1178, %v1473
    %vm1490 = vcmp.lt.f32.partialorder %v1180, %v1474
    %vm1491 = vcmp.lt.f32.partialorder %v1182, %v1475
    %vm1492 = vcmp.lt.f32.partialorder %v1184, %v1476
    %vm1493 = vcmp.lt.f32.partialorder %v1186, %v1477
    %vm1494 = vcmp.lt.f32.partialorder %v1188, %v1478
    %vm1495 = vcmp.lt.f32.partialorder %v1190, %v1479
    %v1496 = vsel %vm1480, %v1160, %v1464
    %v1497 = vsel %vm1481, %v1162, %v1465
    %v1498 = vsel %vm1482, %v1164, %v1466
    %v1499 = vsel %vm1483, %v1166, %v1467
    %v1500 = vsel %vm1484, %v1168, %v1468
    %v1501 = vsel %vm1485, %v1170, %v1469
    %v1502 = vsel %vm1486, %v1172, %v1470
    %v1503 = vsel %vm1487, %v1174, %v1471
    %v1504 = vsel %vm1488, %v1176, %v1472
    %v1505 = vsel %vm1489, %v1178, %v1473
    %v1506 = vsel %vm1490, %v1180, %v1474
    %v1507 = vsel %vm1491, %v1182, %v1475
    %v1508 = vsel %vm1492, %v1184, %v1476
    %v1509 = vsel %vm1493, %v1186, %v1477
    %v1510 = vsel %vm1494, %v1188, %v1478
    %v1511 = vsel %vm1495, %v1190, %v1479
    %1512 = vst.msk [vmem:[#allocation7] sm:$0xff] %vm562, %v1496
    %1513 = vst.msk [vmem:[#allocation7 + $0x8] sm:$0xff] %vm562, %v1497
    %1514 = vst.msk [vmem:[#allocation7 + $0x10] sm:$0xff] %vm562, %v1498
    %1515 = vst.msk [vmem:[#allocation7 + $0x18] sm:$0xff] %vm562, %v1499
    %1516 = vst.msk [vmem:[#allocation7 + $0x20] sm:$0xff] %vm562, %v1500
    %1517 = vst.msk [vmem:[#allocation7 + $0x28] sm:$0xff] %vm562, %v1501
    %1518 = vst.msk [vmem:[#allocation7 + $0x30] sm:$0xff] %vm562, %v1502
    %1519 = vst.msk [vmem:[#allocation7 + $0x38] sm:$0xff] %vm562, %v1503
    %1520 = vst.msk [vmem:[#allocation7 + $0x40] sm:$0xff] %vm562, %v1504
    %1521 = vst.msk [vmem:[#allocation7 + $0x48] sm:$0xff] %vm562, %v1505
    %1522 = vst.msk [vmem:[#allocation7 + $0x50] sm:$0xff] %vm562, %v1506
    %1523 = vst.msk [vmem:[#allocation7 + $0x58] sm:$0xff] %vm562, %v1507
    %1524 = vst.msk [vmem:[#allocation7 + $0x60] sm:$0xff] %vm562, %v1508
    %1525 = vst.msk [vmem:[#allocation7 + $0x68] sm:$0xff] %vm562, %v1509
    %1526 = vst.msk [vmem:[#allocation7 + $0x70] sm:$0xff] %vm562, %v1510
    %1527 = vst.msk [vmem:[#allocation7 + $0x78] sm:$0xff] %vm562, %v1511
    %v1528 = vld [vmem:[#allocation8] sm:$0xff]
    %v1529 = vld [vmem:[#allocation8 + $0x8] sm:$0xff]
    %v1530 = vld [vmem:[#allocation8 + $0x10] sm:$0xff]
    %v1531 = vld [vmem:[#allocation8 + $0x18] sm:$0xff]
    %v1532 = vld [vmem:[#allocation8 + $0x20] sm:$0xff]
    %v1533 = vld [vmem:[#allocation8 + $0x28] sm:$0xff]
    %v1534 = vld [vmem:[#allocation8 + $0x30] sm:$0xff]
    %v1535 = vld [vmem:[#allocation8 + $0x38] sm:$0xff]
    %v1536 = vld [vmem:[#allocation8 + $0x40] sm:$0xff]
    %v1537 = vld [vmem:[#allocation8 + $0x48] sm:$0xff]
    %v1538 = vld [vmem:[#allocation8 + $0x50] sm:$0xff]
    %v1539 = vld [vmem:[#allocation8 + $0x58] sm:$0xff]
    %v1540 = vld [vmem:[#allocation8 + $0x60] sm:$0xff]
    %v1541 = vld [vmem:[#allocation8 + $0x68] sm:$0xff]
    %v1542 = vld [vmem:[#allocation8 + $0x70] sm:$0xff]
    %v1543 = vld [vmem:[#allocation8 + $0x78] sm:$0xff]
    %v1544 = vsel %vm1480, %v1336, %v1528
    %v1545 = vsel %vm1481, %v1337, %v1529
    %v1546 = vsel %vm1482, %v1338, %v1530
    %v1547 = vsel %vm1483, %v1339, %v1531
    %v1548 = vsel %vm1484, %v1340, %v1532
    %v1549 = vsel %vm1485, %v1341, %v1533
    %v1550 = vsel %vm1486, %v1342, %v1534
    %v1551 = vsel %vm1487, %v1343, %v1535
    %v1552 = vsel %vm1488, %v1344, %v1536
    %v1553 = vsel %vm1489, %v1345, %v1537
    %v1554 = vsel %vm1490, %v1346, %v1538
    %v1555 = vsel %vm1491, %v1347, %v1539
    %v1556 = vsel %vm1492, %v1348, %v1540
    %v1557 = vsel %vm1493, %v1349, %v1541
    %v1558 = vsel %vm1494, %v1350, %v1542
    %v1559 = vsel %vm1495, %v1351, %v1543
    %1560 = vst.msk [vmem:[#allocation8] sm:$0xff] %vm562, %v1544
    %1561 = vst.msk [vmem:[#allocation8 + $0x8] sm:$0xff] %vm562, %v1545
    %1562 = vst.msk [vmem:[#allocation8 + $0x10] sm:$0xff] %vm562, %v1546
    %1563 = vst.msk [vmem:[#allocation8 + $0x18] sm:$0xff] %vm562, %v1547
    %1564 = vst.msk [vmem:[#allocation8 + $0x20] sm:$0xff] %vm562, %v1548
    %1565 = vst.msk [vmem:[#allocation8 + $0x28] sm:$0xff] %vm562, %v1549
    %1566 = vst.msk [vmem:[#allocation8 + $0x30] sm:$0xff] %vm562, %v1550
    %1567 = vst.msk [vmem:[#allocation8 + $0x38] sm:$0xff] %vm562, %v1551
    %1568 = vst.msk [vmem:[#allocation8 + $0x40] sm:$0xff] %vm562, %v1552
    %1569 = vst.msk [vmem:[#allocation8 + $0x48] sm:$0xff] %vm562, %v1553
    %1570 = vst.msk [vmem:[#allocation8 + $0x50] sm:$0xff] %vm562, %v1554
    %1571 = vst.msk [vmem:[#allocation8 + $0x58] sm:$0xff] %vm562, %v1555
    %1572 = vst.msk [vmem:[#allocation8 + $0x60] sm:$0xff] %vm562, %v1556
    %1573 = vst.msk [vmem:[#allocation8 + $0x68] sm:$0xff] %vm562, %v1557
    %1574 = vst.msk [vmem:[#allocation8 + $0x70] sm:$0xff] %vm562, %v1558
    %1575 = vst.msk [vmem:[#allocation8 + $0x78] sm:$0xff] %vm562, %v1559
  $region29: #{tpu_custom_call.1} parent=0 // pred_fallthru
    _
  // Predicated region
  $region30: #{tpu_custom_call.1} parent=0 // pred_check
    _
  $region31: #{tpu_custom_call.1} parent=0 // pred_check_branch
    %1577 = sbr.rel (%p22) target = $region33
  $region32: #{tpu_custom_call.1} parent=0 // pred_region
    %v1578 = vld [vmem:[#allocation6] sm:$0xff]
    %v1579 = vld [vmem:[#allocation6 + $0x8] sm:$0xff]
    %v1580 = vld [vmem:[#allocation6 + $0x10] sm:$0xff]
    %v1581 = vld [vmem:[#allocation6 + $0x18] sm:$0xff]
    %v1582 = vld [vmem:[#allocation6 + $0x20] sm:$0xff]
    %v1583 = vld [vmem:[#allocation6 + $0x28] sm:$0xff]
    %v1584 = vld [vmem:[#allocation6 + $0x30] sm:$0xff]
    %v1585 = vld [vmem:[#allocation6 + $0x38] sm:$0xff]
    %v1586 = vld [vmem:[#allocation6 + $0x40] sm:$0xff]
    %v1587 = vld [vmem:[#allocation6 + $0x48] sm:$0xff]
    %v1588 = vld [vmem:[#allocation6 + $0x50] sm:$0xff]
    %v1589 = vld [vmem:[#allocation6 + $0x58] sm:$0xff]
    %v1590 = vld [vmem:[#allocation6 + $0x60] sm:$0xff]
    %v1591 = vld [vmem:[#allocation6 + $0x68] sm:$0xff]
    %v1592 = vld [vmem:[#allocation6 + $0x70] sm:$0xff]
    %v1593 = vld [vmem:[#allocation6 + $0x78] sm:$0xff]
    %1594 = vst.msk [vmem:[%s4] sm:$0xff] %vm562, %v1578
    %1595 = vst.msk [vmem:[%s4 + $0x8] sm:$0xff] %vm562, %v1579
    %1596 = vst.msk [vmem:[%s4 + $0x10] sm:$0xff] %vm562, %v1580
    %1597 = vst.msk [vmem:[%s4 + $0x18] sm:$0xff] %vm562, %v1581
    %1598 = vst.msk [vmem:[%s4 + $0x20] sm:$0xff] %vm562, %v1582
    %1599 = vst.msk [vmem:[%s4 + $0x28] sm:$0xff] %vm562, %v1583
    %1600 = vst.msk [vmem:[%s4 + $0x30] sm:$0xff] %vm562, %v1584
    %1601 = vst.msk [vmem:[%s4 + $0x38] sm:$0xff] %vm562, %v1585
    %1602 = vst.msk [vmem:[%s4 + $0x40] sm:$0xff] %vm562, %v1586
    %1603 = vst.msk [vmem:[%s4 + $0x48] sm:$0xff] %vm562, %v1587
    %1604 = vst.msk [vmem:[%s4 + $0x50] sm:$0xff] %vm562, %v1588
    %1605 = vst.msk [vmem:[%s4 + $0x58] sm:$0xff] %vm562, %v1589
    %1606 = vst.msk [vmem:[%s4 + $0x60] sm:$0xff] %vm562, %v1590
    %1607 = vst.msk [vmem:[%s4 + $0x68] sm:$0xff] %vm562, %v1591
    %1608 = vst.msk [vmem:[%s4 + $0x70] sm:$0xff] %vm562, %v1592
    %1609 = vst.msk [vmem:[%s4 + $0x78] sm:$0xff] %vm562, %v1593
    %v1610 = vld [vmem:[#allocation8] sm:$0xff]
    %v1611 = vld [vmem:[#allocation8 + $0x8] sm:$0xff]
    %v1612 = vld [vmem:[#allocation8 + $0x10] sm:$0xff]
    %v1613 = vld [vmem:[#allocation8 + $0x18] sm:$0xff]
    %v1614 = vld [vmem:[#allocation8 + $0x20] sm:$0xff]
    %v1615 = vld [vmem:[#allocation8 + $0x28] sm:$0xff]
    %v1616 = vld [vmem:[#allocation8 + $0x30] sm:$0xff]
    %v1617 = vld [vmem:[#allocation8 + $0x38] sm:$0xff]
    %v1618 = vld [vmem:[#allocation8 + $0x40] sm:$0xff]
    %v1619 = vld [vmem:[#allocation8 + $0x48] sm:$0xff]
    %v1620 = vld [vmem:[#allocation8 + $0x50] sm:$0xff]
    %v1621 = vld [vmem:[#allocation8 + $0x58] sm:$0xff]
    %v1622 = vld [vmem:[#allocation8 + $0x60] sm:$0xff]
    %v1623 = vld [vmem:[#allocation8 + $0x68] sm:$0xff]
    %v1624 = vld [vmem:[#allocation8 + $0x70] sm:$0xff]
    %v1625 = vld [vmem:[#allocation8 + $0x78] sm:$0xff]
    %1626 = vst.msk [vmem:[%s5] sm:$0xff] %vm562, %v1610
    %1627 = vst.msk [vmem:[%s5 + $0x8] sm:$0xff] %vm562, %v1611
    %1628 = vst.msk [vmem:[%s5 + $0x10] sm:$0xff] %vm562, %v1612
    %1629 = vst.msk [vmem:[%s5 + $0x18] sm:$0xff] %vm562, %v1613
    %1630 = vst.msk [vmem:[%s5 + $0x20] sm:$0xff] %vm562, %v1614
    %1631 = vst.msk [vmem:[%s5 + $0x28] sm:$0xff] %vm562, %v1615
    %1632 = vst.msk [vmem:[%s5 + $0x30] sm:$0xff] %vm562, %v1616
    %1633 = vst.msk [vmem:[%s5 + $0x38] sm:$0xff] %vm562, %v1617
    %1634 = vst.msk [vmem:[%s5 + $0x40] sm:$0xff] %vm562, %v1618
    %1635 = vst.msk [vmem:[%s5 + $0x48] sm:$0xff] %vm562, %v1619
    %1636 = vst.msk [vmem:[%s5 + $0x50] sm:$0xff] %vm562, %v1620
    %1637 = vst.msk [vmem:[%s5 + $0x58] sm:$0xff] %vm562, %v1621
    %1638 = vst.msk [vmem:[%s5 + $0x60] sm:$0xff] %vm562, %v1622
    %1639 = vst.msk [vmem:[%s5 + $0x68] sm:$0xff] %vm562, %v1623
    %1640 = vst.msk [vmem:[%s5 + $0x70] sm:$0xff] %vm562, %v1624
    %1641 = vst.msk [vmem:[%s5 + $0x78] sm:$0xff] %vm562, %v1625
  $region33: #{tpu_custom_call.1} parent=0 // pred_fallthru
    _
  // Predicated region
  $region34: #{tpu_custom_call.1} parent=0 // pred_check
    _
  $region35: #{tpu_custom_call.1} parent=0 // pred_check_branch
    %1643 = sbr.rel (0) target = $region37
  $region36: #{tpu_custom_call.1} parent=0 // pred_region
    _
  $region37: #{tpu_custom_call.1} parent=0 // pred_fallthru
    _
  // Predicated region
  $region38: #{tpu_custom_call.1} parent=0 // pred_check
    _
  $region39: #{tpu_custom_call.1} parent=0 // pred_check_branch
    %1645 = sbr.rel (0) target = $region41
  $region40: #{tpu_custom_call.1} parent=0 // pred_region
    _
  $region41: #{tpu_custom_call.1} parent=0 // pred_fallthru
    _
  // Predicated region
  $region42: #{tpu_custom_call.1} parent=0 // pred_check
    _
  $region43: #{tpu_custom_call.1} parent=0 // pred_check_branch
    %1647 = sbr.rel (0) target = $region45
  $region44: #{tpu_custom_call.1} parent=0 // pred_region
    _
  $region45: #{tpu_custom_call.1} parent=0 // pred_fallthru
    _
  // Predicated region
  $region46: #{tpu_custom_call.1} parent=0 // pred_check
    _
  $region47: #{tpu_custom_call.1} parent=0 // pred_check_branch
    %1649 = sbr.rel (0) target = $region49
  $region48: #{tpu_custom_call.1} parent=0 // pred_region
    _
  $region49: #{tpu_custom_call.1} parent=0 // pred_fallthru
    _

</llo_original>
